<compile_context>
chip_gen: v6e
topology: v6e:2x2x1
jax: 0.10.0
libtpu: 0.0.40
codegen_flags: <defaults>
</compile_context>

<pallas_src>
import functools

import jax
import jax.numpy as jnp
from jax import lax
from jax.experimental import pallas as pl
from jax.experimental.pallas import tpu as pltpu


_UNROLL_LAYER_LIMIT = 8  # fully unroll the layer chain up to this depth


def _round_up(x, m):
    return (x + m - 1) // m * m


def _resnet_kernel(x_ref, w1_ref, b1_ref, w2_ref, b2_ref, wout_ref, bout_ref,
                   out_ref):
    """One grid step == one batch tile; all residual blocks + head fused.

    x_ref    : (TB, Dp)    f32   batch tile of input features
    w1_ref   : (L, Dp, Hp) bf16  stacked first-linear weights (VMEM resident)
    b1_ref   : (L, 1, Hp)  f32
    w2_ref   : (L, Hp, Dp) bf16  stacked second-linear weights (VMEM resident)
    b2_ref   : (L, 1, Dp)  f32
    wout_ref : (Dp, Op)    bf16  final head weight
    bout_ref : (1, Op)     f32
    out_ref  : (TB, Op)    f32
    """
    num_layers = w1_ref.shape[0]
    feat = x_ref[...].astype(jnp.float32)          # residual stream kept in f32

    def layer(l, feat):
        # mlp(x) = ReLU( ReLU(x @ W1 + b1) @ W2 + b2 ) — bf16 MXU, f32 accum.
        h = jnp.dot(feat.astype(jnp.bfloat16), w1_ref[l],
                    preferred_element_type=jnp.float32)
        h = jnp.maximum(h + b1_ref[l], 0.0)        # (TB, Hp) f32 bias + ReLU
        y = jnp.dot(h.astype(jnp.bfloat16), w2_ref[l],
                    preferred_element_type=jnp.float32)
        y = jnp.maximum(y + b2_ref[l], 0.0)        # (TB, Dp)
        return feat + y                            # residual add (f32)

    if num_layers <= _UNROLL_LAYER_LIMIT:
        # Static unroll: whole dependency chain visible to the scheduler.
        for l in range(num_layers):
            feat = layer(l, feat)
    else:
        # Layers are serially dependent; a fori_loop bounds live ranges and
        # code size for deep stacks (dynamic leading-dim ref indexing).
        feat = lax.fori_loop(0, num_layers, layer, feat)

    # Final linear head (lane-dense Op-wide output slab).
    pred = jnp.dot(feat.astype(jnp.bfloat16), wout_ref[...],
                   preferred_element_type=jnp.float32)
    out_ref[...] = (pred + bout_ref[...]).astype(out_ref.dtype)


def prepare_params(w1s, b1s, w2s, b2s, wout, bout):
    """Pad feature dims to multiples of 128 and cast weights to bf16, ONCE.

    Zero padding is mathematically exact through matmul + bias + ReLU +
    residual (padded rows/cols only contribute zeros); padded output lanes are
    sliced off in the forward wrapper."""
    L, D, H = w1s.shape
    O = wout.shape[1]
    Dp, Hp, Op = _round_up(D, 128), _round_up(H, 128), _round_up(O, 128)
    f32, bf16 = jnp.float32, jnp.bfloat16
    w1p = jnp.zeros((L, Dp, Hp), bf16).at[:, :D, :H].set(w1s.astype(bf16))
    b1p = jnp.zeros((L, 1, Hp), f32).at[:, :, :H].set(b1s.astype(f32))
    w2p = jnp.zeros((L, Hp, Dp), bf16).at[:, :H, :D].set(w2s.astype(bf16))
    b2p = jnp.zeros((L, 1, Dp), f32).at[:, :, :D].set(b2s.astype(f32))
    woutp = jnp.zeros((Dp, Op), bf16).at[:D, :O].set(wout.astype(bf16))
    boutp = jnp.zeros((1, Op), f32).at[:, :O].set(bout.astype(f32))
    return (w1p, b1p, w2p, b2p, woutp, boutp)


def _pick_batch_tile(B):
    if B <= 16:
        return 16                    # bf16 LHS packs 16 rows per vreg
    if B <= 128:
        return _round_up(B, 16)      # single (8,128)-aligned tile
    if B <= 256:
        return 128                   # >=2 tiles once B > 128 (v7x megacore)
    return 256                       # fills the 256x256 MXU; always >=2 tiles


def _vmem_capacity_bytes():
    try:
        return int(pltpu.get_tpu_info().vmem_capacity_bytes)
    except Exception:                # fall back to the smallest (v7x per-TC)
        return 64 << 20


@functools.partial(jax.jit,
                   static_argnames=("out_dim", "single_buffer_weights"))
def _resnet_forward_impl(x, w1p, b1p, w2p, b2p, woutp, boutp, *, out_dim,
                         single_buffer_weights):
    B, D = x.shape
    L, Dp, Hp = w1p.shape
    Op = woutp.shape[1]

    TB = _pick_batch_tile(B)
    Bp = _round_up(B, TB)

    # Only the batch is padded per call (weights were pre-padded once).
    xp = jnp.zeros((Bp, Dp), jnp.float32).at[:B, :D].set(x.astype(jnp.float32))

    # Resident weights/biases: constant index_map -> single-buffer them.
    weight_kw = (dict(pipeline_mode=pl.Buffered(1))
                 if single_buffer_weights else {})

    # Generation-aware VMEM budget: weights (x1 or x2 buffers), double-buffered
    # x/out tiles, f32+bf16 intermediates, plus headroom for Mosaic scratch.
    wb = 1 if single_buffer_weights else 2
    weight_bytes = wb * (2 * (int(w1p.size) + int(w2p.size) + int(woutp.size))
                         + 4 * (int(b1p.size) + int(b2p.size) + int(boutp.size)))
    io_bytes = 2 * TB * Dp * 4 + 2 * TB * Op * 4
    interm_bytes = TB * (Hp + Dp) * (4 + 2)
    vmem_needed = weight_bytes + io_bytes + interm_bytes + (4 << 20)
    vmem_limit = min(int(0.8 * _vmem_capacity_bytes()),
                     max(vmem_needed, 32 << 20))

    grid_spec = pltpu.PrefetchScalarGridSpec(
        num_scalar_prefetch=0,
        grid=(Bp // TB,),                                    # batch tiles
        in_specs=[
            pl.BlockSpec((TB, Dp), lambda i: (i, 0)),        # x batch tile
            pl.BlockSpec((L, Dp, Hp), lambda i: (0, 0, 0), **weight_kw),
            pl.BlockSpec((L, 1, Hp), lambda i: (0, 0, 0), **weight_kw),
            pl.BlockSpec((L, Hp, Dp), lambda i: (0, 0, 0), **weight_kw),
            pl.BlockSpec((L, 1, Dp), lambda i: (0, 0, 0), **weight_kw),
            pl.BlockSpec((Dp, Op), lambda i: (0, 0), **weight_kw),
            pl.BlockSpec((1, Op), lambda i: (0, 0), **weight_kw),
        ],
        out_specs=pl.BlockSpec((TB, Op), lambda i: (i, 0)),
    )

    out_padded = pl.pallas_call(
        _resnet_kernel,
        out_shape=jax.ShapeDtypeStruct((Bp, Op), jnp.float32),
        grid_spec=grid_spec,
        compiler_params=pltpu.CompilerParams(
            dimension_semantics=("parallel",),   # batch tiles -> v7x megacore
            vmem_limit_bytes=vmem_limit),
    )(xp, w1p, b1p, w2p, b2p, woutp, boutp)

    return out_padded[:B, :out_dim]


_SINGLE_BUFFER_WEIGHTS_OK = True


def resnet_forward(x, padded_params, out_dim):
    """Forward pass using the pre-padded bf16 params from prepare_params()."""
    global _SINGLE_BUFFER_WEIGHTS_OK
    if _SINGLE_BUFFER_WEIGHTS_OK:
        try:
            return _resnet_forward_impl(x, *padded_params, out_dim=out_dim,
                                        single_buffer_weights=True)
        except Exception:
            # Some jax/Mosaic builds may reject pl.Buffered(1); fall back to
            # default (double-buffered) weight specs — correctness identical.
            _SINGLE_BUFFER_WEIGHTS_OK = False
    return _resnet_forward_impl(x, *padded_params, out_dim=out_dim,
                                single_buffer_weights=False)


def _init_params(key, data_dim, hidden_dim, num_layers, output_dim):
    """Deterministic init mimicking nn.Linear's U(-1/sqrt(fan_in), 1/sqrt(fan_in))."""
    keys = jax.random.split(key, 4 * num_layers + 2)
    k1 = 1.0 / jnp.sqrt(jnp.float32(data_dim))
    k2 = 1.0 / jnp.sqrt(jnp.float32(hidden_dim))

    w1s = jnp.stack([
        jax.random.uniform(keys[4 * i + 0], (data_dim, hidden_dim),
                           jnp.float32, -k1, k1) for i in range(num_layers)])
    b1s = jnp.stack([
        jax.random.uniform(keys[4 * i + 1], (1, hidden_dim),
                           jnp.float32, -k1, k1) for i in range(num_layers)])
    w2s = jnp.stack([
        jax.random.uniform(keys[4 * i + 2], (hidden_dim, data_dim),
                           jnp.float32, -k2, k2) for i in range(num_layers)])
    b2s = jnp.stack([
        jax.random.uniform(keys[4 * i + 3], (1, data_dim),
                           jnp.float32, -k2, k2) for i in range(num_layers)])
    wout = jax.random.uniform(keys[-2], (data_dim, output_dim),
                              jnp.float32, -k1, k1)
    bout = jax.random.uniform(keys[-1], (1, output_dim),
                              jnp.float32, -k1, k1)
    return w1s, b1s, w2s, b2s, wout, bout


def _reference_bf16(x, w1s, b1s, w2s, b2s, wout, bout):
    """Pure-JAX reference matching the kernel's bf16-matmul / f32-accum scheme."""
    bf16 = jnp.bfloat16
    feat = x.astype(jnp.float32)
    for i in range(w1s.shape[0]):
        h = jnp.dot(feat.astype(bf16), w1s[i].astype(bf16),
                    preferred_element_type=jnp.float32)
        h = jnp.maximum(h + b1s[i], 0.0)
        y = jnp.dot(h.astype(bf16), w2s[i].astype(bf16),
                    preferred_element_type=jnp.float32)
        y = jnp.maximum(y + b2s[i], 0.0)
        feat = feat + y
    pred = jnp.dot(feat.astype(bf16), wout.astype(bf16),
                   preferred_element_type=jnp.float32)
    return pred + bout


def _reference_f32(x, w1s, b1s, w2s, b2s, wout, bout):
    """True f32 reference matching the PyTorch module's numerics."""
    feat = x.astype(jnp.float32)
    for i in range(w1s.shape[0]):
        h = jnp.maximum(feat @ w1s[i] + b1s[i], 0.0)
        y = jnp.maximum(h @ w2s[i] + b2s[i], 0.0)
        feat = feat + y
    return feat @ wout + bout


if __name__ == "__main__":
    # Small, module-consistent shapes: ResNet(data_dim=32, hidden_dim=64,
    # num_layers=3, output_dim=1), batch of 8 points.
    B, data_dim, hidden_dim, num_layers, output_dim = 8, 32, 64, 3, 1

    key = jax.random.PRNGKey(0)
    kx, kp = jax.random.split(key)
    x = jax.random.normal(kx, (B, data_dim), jnp.float32)
    params = _init_params(kp, data_dim, hidden_dim, num_layers, output_dim)

    padded = prepare_params(*params)          # pad + bf16 cast, once at init
    padded = jax.block_until_ready(padded)

    pred = resnet_forward(x, padded, output_dim)
    pred = jax.block_until_ready(pred)

    ref_bf16 = _reference_bf16(x, *params)    # matches kernel numerics exactly
    ref_f32 = _reference_f32(x, *params)      # true f32 module semantics

    assert pred.shape == (B, output_dim), pred.shape
    assert jnp.allclose(pred, ref_bf16, atol=2e-3, rtol=2e-3), \
        f"bf16-ref max err {jnp.max(jnp.abs(pred - ref_bf16))}"
    assert jnp.allclose(pred, ref_f32, atol=5e-2, rtol=5e-2), \
        f"f32-ref max err {jnp.max(jnp.abs(pred - ref_f32))}"

    print("KERNEL_OK")
</pallas_src>

<mosaic_0001>
module attributes {stable_mosaic.version = 11 : i64} {
  func.func @_resnet_kernel(%arg0: i32, %arg1: memref<16x128xf32, #tpu.memory_space<vmem>>, %arg2: memref<3x128x128xbf16, #tpu.memory_space<vmem>>, %arg3: memref<3x1x128xf32, #tpu.memory_space<vmem>>, %arg4: memref<3x128x128xbf16, #tpu.memory_space<vmem>>, %arg5: memref<3x1x128xf32, #tpu.memory_space<vmem>>, %arg6: memref<128x128xbf16, #tpu.memory_space<vmem>>, %arg7: memref<1x128xf32, #tpu.memory_space<vmem>>, %arg8: memref<16x128xf32, #tpu.memory_space<vmem>>) attributes {dimension_semantics = [#tpu.dimension_semantics<parallel>], iteration_bounds = array<i64: 1>, scalar_prefetch = 0 : i64, scratch_operands = 0 : i64, tpu.core_type = #tpu.core_type<tc>, window_params = [{transform_indices = @transform_0, window_bounds = array<i64: 16, 128>}, {pipeline_mode = #tpu.pipeline_mode<synchronous>, transform_indices = @transform_1, window_bounds = array<i64: 3, 128, 128>}, {pipeline_mode = #tpu.pipeline_mode<synchronous>, transform_indices = @transform_2, window_bounds = array<i64: 3, 1, 128>}, {pipeline_mode = #tpu.pipeline_mode<synchronous>, transform_indices = @transform_3, window_bounds = array<i64: 3, 128, 128>}, {pipeline_mode = #tpu.pipeline_mode<synchronous>, transform_indices = @transform_4, window_bounds = array<i64: 3, 1, 128>}, {pipeline_mode = #tpu.pipeline_mode<synchronous>, transform_indices = @transform_5, window_bounds = array<i64: 128, 128>}, {pipeline_mode = #tpu.pipeline_mode<synchronous>, transform_indices = @transform_6, window_bounds = array<i64: 1, 128>}, {transform_indices = @transform_7, window_bounds = array<i64: 16, 128>}]} {
    %c0 = arith.constant 0 : index
    %c0_0 = arith.constant 0 : index
    %0 = vector.load %arg1[%c0, %c0_0] : memref<16x128xf32, #tpu.memory_space<vmem>>, vector<16x128xf32>
    %1 = arith.truncf %0 : vector<16x128xf32> to vector<16x128xbf16>
    %c0_1 = arith.constant 0 : index
    %c0_2 = arith.constant 0 : index
    %c0_3 = arith.constant 0 : index
    %2 = vector.load %arg2[%c0_1, %c0_2, %c0_3] : memref<3x128x128xbf16, #tpu.memory_space<vmem>>, vector<1x128x128xbf16>
    %3 = vector.shape_cast %2 : vector<1x128x128xbf16> to vector<128x128xbf16>
    %cst = arith.constant dense<0.000000e+00> : vector<16x128xf32>
    %4 = tpu.matmul %1, %3, %cst {dimension_numbers = #tpu.dot_dimension_numbers<[1], [0], [0], [1], [0, 0, 1, 1], [], []>} : vector<16x128xbf16>, vector<128x128xbf16>, vector<16x128xf32> -> vector<16x128xf32>
    %c0_4 = arith.constant 0 : index
    %c0_5 = arith.constant 0 : index
    %c0_6 = arith.constant 0 : index
    %5 = vector.load %arg3[%c0_4, %c0_5, %c0_6] : memref<3x1x128xf32, #tpu.memory_space<vmem>>, vector<1x1x128xf32>
    %6 = vector.shape_cast %5 : vector<1x1x128xf32> to vector<1x128xf32>
    %7 = vector.broadcast %6 : vector<1x128xf32> to vector<16x128xf32>
    %8 = arith.addf %4, %7 : vector<16x128xf32>
    %cst_7 = arith.constant 0.000000e+00 : f32
    %9 = vector.broadcast %cst_7 : f32 to vector<16x128xf32>
    %10 = arith.maximumf %8, %9 : vector<16x128xf32>
    %11 = arith.truncf %10 : vector<16x128xf32> to vector<16x128xbf16>
    %c0_8 = arith.constant 0 : index
    %c0_9 = arith.constant 0 : index
    %c0_10 = arith.constant 0 : index
    %12 = vector.load %arg4[%c0_8, %c0_9, %c0_10] : memref<3x128x128xbf16, #tpu.memory_space<vmem>>, vector<1x128x128xbf16>
    %13 = vector.shape_cast %12 : vector<1x128x128xbf16> to vector<128x128xbf16>
    %cst_11 = arith.constant dense<0.000000e+00> : vector<16x128xf32>
    %14 = tpu.matmul %11, %13, %cst_11 {dimension_numbers = #tpu.dot_dimension_numbers<[1], [0], [0], [1], [0, 0, 1, 1], [], []>} : vector<16x128xbf16>, vector<128x128xbf16>, vector<16x128xf32> -> vector<16x128xf32>
    %c0_12 = arith.constant 0 : index
    %c0_13 = arith.constant 0 : index
    %c0_14 = arith.constant 0 : index
    %15 = vector.load %arg5[%c0_12, %c0_13, %c0_14] : memref<3x1x128xf32, #tpu.memory_space<vmem>>, vector<1x1x128xf32>
    %16 = vector.shape_cast %15 : vector<1x1x128xf32> to vector<1x128xf32>
    %17 = vector.broadcast %16 : vector<1x128xf32> to vector<16x128xf32>
    %18 = arith.addf %14, %17 : vector<16x128xf32>
    %cst_15 = arith.constant 0.000000e+00 : f32
    %19 = vector.broadcast %cst_15 : f32 to vector<16x128xf32>
    %20 = arith.maximumf %18, %19 : vector<16x128xf32>
    %21 = arith.addf %0, %20 : vector<16x128xf32>
    %22 = arith.truncf %21 : vector<16x128xf32> to vector<16x128xbf16>
    %c1 = arith.constant 1 : index
    %c0_16 = arith.constant 0 : index
    %c0_17 = arith.constant 0 : index
    %23 = vector.load %arg2[%c1, %c0_16, %c0_17] : memref<3x128x128xbf16, #tpu.memory_space<vmem>>, vector<1x128x128xbf16>
    %24 = vector.shape_cast %23 : vector<1x128x128xbf16> to vector<128x128xbf16>
    %cst_18 = arith.constant dense<0.000000e+00> : vector<16x128xf32>
    %25 = tpu.matmul %22, %24, %cst_18 {dimension_numbers = #tpu.dot_dimension_numbers<[1], [0], [0], [1], [0, 0, 1, 1], [], []>} : vector<16x128xbf16>, vector<128x128xbf16>, vector<16x128xf32> -> vector<16x128xf32>
    %c1_19 = arith.constant 1 : index
    %c0_20 = arith.constant 0 : index
    %c0_21 = arith.constant 0 : index
    %26 = vector.load %arg3[%c1_19, %c0_20, %c0_21] : memref<3x1x128xf32, #tpu.memory_space<vmem>>, vector<1x1x128xf32>
    %27 = vector.shape_cast %26 : vector<1x1x128xf32> to vector<1x128xf32>
    %28 = vector.broadcast %27 : vector<1x128xf32> to vector<16x128xf32>
    %29 = arith.addf %25, %28 : vector<16x128xf32>
    %cst_22 = arith.constant 0.000000e+00 : f32
    %30 = vector.broadcast %cst_22 : f32 to vector<16x128xf32>
    %31 = arith.maximumf %29, %30 : vector<16x128xf32>
    %32 = arith.truncf %31 : vector<16x128xf32> to vector<16x128xbf16>
    %c1_23 = arith.constant 1 : index
    %c0_24 = arith.constant 0 : index
    %c0_25 = arith.constant 0 : index
    %33 = vector.load %arg4[%c1_23, %c0_24, %c0_25] : memref<3x128x128xbf16, #tpu.memory_space<vmem>>, vector<1x128x128xbf16>
    %34 = vector.shape_cast %33 : vector<1x128x128xbf16> to vector<128x128xbf16>
    %cst_26 = arith.constant dense<0.000000e+00> : vector<16x128xf32>
    %35 = tpu.matmul %32, %34, %cst_26 {dimension_numbers = #tpu.dot_dimension_numbers<[1], [0], [0], [1], [0, 0, 1, 1], [], []>} : vector<16x128xbf16>, vector<128x128xbf16>, vector<16x128xf32> -> vector<16x128xf32>
    %c1_27 = arith.constant 1 : index
    %c0_28 = arith.constant 0 : index
    %c0_29 = arith.constant 0 : index
    %36 = vector.load %arg5[%c1_27, %c0_28, %c0_29] : memref<3x1x128xf32, #tpu.memory_space<vmem>>, vector<1x1x128xf32>
    %37 = vector.shape_cast %36 : vector<1x1x128xf32> to vector<1x128xf32>
    %38 = vector.broadcast %37 : vector<1x128xf32> to vector<16x128xf32>
    %39 = arith.addf %35, %38 : vector<16x128xf32>
    %cst_30 = arith.constant 0.000000e+00 : f32
    %40 = vector.broadcast %cst_30 : f32 to vector<16x128xf32>
    %41 = arith.maximumf %39, %40 : vector<16x128xf32>
    %42 = arith.addf %21, %41 : vector<16x128xf32>
    %43 = arith.truncf %42 : vector<16x128xf32> to vector<16x128xbf16>
    %c2 = arith.constant 2 : index
    %c0_31 = arith.constant 0 : index
    %c0_32 = arith.constant 0 : index
    %44 = vector.load %arg2[%c2, %c0_31, %c0_32] : memref<3x128x128xbf16, #tpu.memory_space<vmem>>, vector<1x128x128xbf16>
    %45 = vector.shape_cast %44 : vector<1x128x128xbf16> to vector<128x128xbf16>
    %cst_33 = arith.constant dense<0.000000e+00> : vector<16x128xf32>
    %46 = tpu.matmul %43, %45, %cst_33 {dimension_numbers = #tpu.dot_dimension_numbers<[1], [0], [0], [1], [0, 0, 1, 1], [], []>} : vector<16x128xbf16>, vector<128x128xbf16>, vector<16x128xf32> -> vector<16x128xf32>
    %c2_34 = arith.constant 2 : index
    %c0_35 = arith.constant 0 : index
    %c0_36 = arith.constant 0 : index
    %47 = vector.load %arg3[%c2_34, %c0_35, %c0_36] : memref<3x1x128xf32, #tpu.memory_space<vmem>>, vector<1x1x128xf32>
    %48 = vector.shape_cast %47 : vector<1x1x128xf32> to vector<1x128xf32>
    %49 = vector.broadcast %48 : vector<1x128xf32> to vector<16x128xf32>
    %50 = arith.addf %46, %49 : vector<16x128xf32>
    %cst_37 = arith.constant 0.000000e+00 : f32
    %51 = vector.broadcast %cst_37 : f32 to vector<16x128xf32>
    %52 = arith.maximumf %50, %51 : vector<16x128xf32>
    %53 = arith.truncf %52 : vector<16x128xf32> to vector<16x128xbf16>
    %c2_38 = arith.constant 2 : index
    %c0_39 = arith.constant 0 : index
    %c0_40 = arith.constant 0 : index
    %54 = vector.load %arg4[%c2_38, %c0_39, %c0_40] : memref<3x128x128xbf16, #tpu.memory_space<vmem>>, vector<1x128x128xbf16>
    %55 = vector.shape_cast %54 : vector<1x128x128xbf16> to vector<128x128xbf16>
    %cst_41 = arith.constant dense<0.000000e+00> : vector<16x128xf32>
    %56 = tpu.matmul %53, %55, %cst_41 {dimension_numbers = #tpu.dot_dimension_numbers<[1], [0], [0], [1], [0, 0, 1, 1], [], []>} : vector<16x128xbf16>, vector<128x128xbf16>, vector<16x128xf32> -> vector<16x128xf32>
    %c2_42 = arith.constant 2 : index
    %c0_43 = arith.constant 0 : index
    %c0_44 = arith.constant 0 : index
    %57 = vector.load %arg5[%c2_42, %c0_43, %c0_44] : memref<3x1x128xf32, #tpu.memory_space<vmem>>, vector<1x1x128xf32>
    %58 = vector.shape_cast %57 : vector<1x1x128xf32> to vector<1x128xf32>
    %59 = vector.broadcast %58 : vector<1x128xf32> to vector<16x128xf32>
    %60 = arith.addf %56, %59 : vector<16x128xf32>
    %cst_45 = arith.constant 0.000000e+00 : f32
    %61 = vector.broadcast %cst_45 : f32 to vector<16x128xf32>
    %62 = arith.maximumf %60, %61 : vector<16x128xf32>
    %63 = arith.addf %42, %62 : vector<16x128xf32>
    %64 = arith.truncf %63 : vector<16x128xf32> to vector<16x128xbf16>
    %c0_46 = arith.constant 0 : index
    %c0_47 = arith.constant 0 : index
    %65 = vector.load %arg6[%c0_46, %c0_47] : memref<128x128xbf16, #tpu.memory_space<vmem>>, vector<128x128xbf16>
    %cst_48 = arith.constant dense<0.000000e+00> : vector<16x128xf32>
    %66 = tpu.matmul %64, %65, %cst_48 {dimension_numbers = #tpu.dot_dimension_numbers<[1], [0], [0], [1], [0, 0, 1, 1], [], []>} : vector<16x128xbf16>, vector<128x128xbf16>, vector<16x128xf32> -> vector<16x128xf32>
    %c0_49 = arith.constant 0 : index
    %c0_50 = arith.constant 0 : index
    %67 = vector.load %arg7[%c0_49, %c0_50] : memref<1x128xf32, #tpu.memory_space<vmem>>, vector<1x128xf32>
    %68 = vector.broadcast %67 : vector<1x128xf32> to vector<16x128xf32>
    %69 = arith.addf %66, %68 : vector<16x128xf32>
    %c0_51 = arith.constant 0 : index
    %c0_52 = arith.constant 0 : index
    %70 = vector.load %arg8[%c0_51, %c0_52] : memref<16x128xf32, #tpu.memory_space<vmem>>, vector<16x128xf32>
    tpu.vector_store %arg8[%c0_51, %c0_52], %69 {strides = array<i32>} : memref<16x128xf32, #tpu.memory_space<vmem>>, vector<16x128xf32>,
    return
  }
  func.func @transform_0(%arg0: i32) -> (i32, i32) {
    %c0_i32 = arith.constant 0 : i32
    %c0_i32_0 = arith.constant 0 : i32
    return %arg0, %c0_i32 : i32, i32
  }
  func.func @transform_1(%arg0: i32) -> (i32, i32, i32) {
    %c0_i32 = arith.constant 0 : i32
    %c0_i32_0 = arith.constant 0 : i32
    %c0_i32_1 = arith.constant 0 : i32
    %c0_i32_2 = arith.constant 0 : i32
    return %c0_i32, %c0_i32_0, %c0_i32_1 : i32, i32, i32
  }
  func.func @transform_2(%arg0: i32) -> (i32, i32, i32) {
    %c0_i32 = arith.constant 0 : i32
    %c0_i32_0 = arith.constant 0 : i32
    %c0_i32_1 = arith.constant 0 : i32
    %c0_i32_2 = arith.constant 0 : i32
    return %c0_i32, %c0_i32_0, %c0_i32_1 : i32, i32, i32
  }
  func.func @transform_3(%arg0: i32) -> (i32, i32, i32) {
    %c0_i32 = arith.constant 0 : i32
    %c0_i32_0 = arith.constant 0 : i32
    %c0_i32_1 = arith.constant 0 : i32
    %c0_i32_2 = arith.constant 0 : i32
    return %c0_i32, %c0_i32_0, %c0_i32_1 : i32, i32, i32
  }
  func.func @transform_4(%arg0: i32) -> (i32, i32, i32) {
    %c0_i32 = arith.constant 0 : i32
    %c0_i32_0 = arith.constant 0 : i32
    %c0_i32_1 = arith.constant 0 : i32
    %c0_i32_2 = arith.constant 0 : i32
    return %c0_i32, %c0_i32_0, %c0_i32_1 : i32, i32, i32
  }
  func.func @transform_5(%arg0: i32) -> (i32, i32) {
    %c0_i32 = arith.constant 0 : i32
    %c0_i32_0 = arith.constant 0 : i32
    %c0_i32_1 = arith.constant 0 : i32
    return %c0_i32, %c0_i32_0 : i32, i32
  }
  func.func @transform_6(%arg0: i32) -> (i32, i32) {
    %c0_i32 = arith.constant 0 : i32
    %c0_i32_0 = arith.constant 0 : i32
    %c0_i32_1 = arith.constant 0 : i32
    return %c0_i32, %c0_i32_0 : i32, i32
  }
  func.func @transform_7(%arg0: i32) -> (i32, i32) {
    %c0_i32 = arith.constant 0 : i32
    %c0_i32_0 = arith.constant 0 : i32
    return %arg0, %c0_i32 : i32, i32
  }
}

module attributes {stable_mosaic.version = 11 : i64} {
  func.func @_resnet_kernel(%arg0: i32, %arg1: memref<16x128xf32, #tpu.memory_space<vmem>>, %arg2: memref<3x128x128xbf16, #tpu.memory_space<vmem>>, %arg3: memref<3x1x128xf32, #tpu.memory_space<vmem>>, %arg4: memref<3x128x128xbf16, #tpu.memory_space<vmem>>, %arg5: memref<3x1x128xf32, #tpu.memory_space<vmem>>, %arg6: memref<128x128xbf16, #tpu.memory_space<vmem>>, %arg7: memref<1x128xf32, #tpu.memory_space<vmem>>, %arg8: memref<16x128xf32, #tpu.memory_space<vmem>>) attributes {dimension_semantics = [#tpu.dimension_semantics<parallel>], iteration_bounds = array<i64: 1>, scalar_prefetch = 0 : i64, scratch_operands = 0 : i64, tpu.core_type = #tpu.core_type<tc>, window_params = [{transform_indices = @transform_0, window_bounds = array<i64: 16, 128>}, {pipeline_mode = #tpu.pipeline_mode<synchronous>, transform_indices = @transform_1, window_bounds = array<i64: 3, 128, 128>}, {pipeline_mode = #tpu.pipeline_mode<synchronous>, transform_indices = @transform_2, window_bounds = array<i64: 3, 1, 128>}, {pipeline_mode = #tpu.pipeline_mode<synchronous>, transform_indices = @transform_3, window_bounds = array<i64: 3, 128, 128>}, {pipeline_mode = #tpu.pipeline_mode<synchronous>, transform_indices = @transform_4, window_bounds = array<i64: 3, 1, 128>}, {pipeline_mode = #tpu.pipeline_mode<synchronous>, transform_indices = @transform_5, window_bounds = array<i64: 128, 128>}, {pipeline_mode = #tpu.pipeline_mode<synchronous>, transform_indices = @transform_6, window_bounds = array<i64: 1, 128>}, {transform_indices = @transform_7, window_bounds = array<i64: 16, 128>}]} {
    %c0 = arith.constant 0 : index
    %c0_0 = arith.constant 0 : index
    %0 = vector.load %arg1[%c0, %c0_0] : memref<16x128xf32, #tpu.memory_space<vmem>>, vector<16x128xf32>
    %1 = arith.truncf %0 : vector<16x128xf32> to vector<16x128xbf16>
    %c0_1 = arith.constant 0 : index
    %c0_2 = arith.constant 0 : index
    %c0_3 = arith.constant 0 : index
    %2 = vector.load %arg2[%c0_1, %c0_2, %c0_3] : memref<3x128x128xbf16, #tpu.memory_space<vmem>>, vector<1x128x128xbf16>
    %3 = vector.shape_cast %2 : vector<1x128x128xbf16> to vector<128x128xbf16>
    %cst = arith.constant dense<0.000000e+00> : vector<16x128xf32>
    %4 = tpu.matmul %1, %3, %cst {dimension_numbers = #tpu.dot_dimension_numbers<[1], [0], [0], [1], [0, 0, 1, 1], [], []>} : vector<16x128xbf16>, vector<128x128xbf16>, vector<16x128xf32> -> vector<16x128xf32>
    %c0_4 = arith.constant 0 : index
    %c0_5 = arith.constant 0 : index
    %c0_6 = arith.constant 0 : index
    %5 = vector.load %arg3[%c0_4, %c0_5, %c0_6] : memref<3x1x128xf32, #tpu.memory_space<vmem>>, vector<1x1x128xf32>
    %6 = vector.shape_cast %5 : vector<1x1x128xf32> to vector<1x128xf32>
    %7 = vector.broadcast %6 : vector<1x128xf32> to vector<16x128xf32>
    %8 = arith.addf %4, %7 : vector<16x128xf32>
    %cst_7 = arith.constant 0.000000e+00 : f32
    %9 = vector.broadcast %cst_7 : f32 to vector<16x128xf32>
    %10 = arith.maximumf %8, %9 : vector<16x128xf32>
    %11 = arith.truncf %10 : vector<16x128xf32> to vector<16x128xbf16>
    %c0_8 = arith.constant 0 : index
    %c0_9 = arith.constant 0 : index
    %c0_10 = arith.constant 0 : index
    %12 = vector.load %arg4[%c0_8, %c0_9, %c0_10] : memref<3x128x128xbf16, #tpu.memory_space<vmem>>, vector<1x128x128xbf16>
    %13 = vector.shape_cast %12 : vector<1x128x128xbf16> to vector<128x128xbf16>
    %cst_11 = arith.constant dense<0.000000e+00> : vector<16x128xf32>
    %14 = tpu.matmul %11, %13, %cst_11 {dimension_numbers = #tpu.dot_dimension_numbers<[1], [0], [0], [1], [0, 0, 1, 1], [], []>} : vector<16x128xbf16>, vector<128x128xbf16>, vector<16x128xf32> -> vector<16x128xf32>
    %c0_12 = arith.constant 0 : index
    %c0_13 = arith.constant 0 : index
    %c0_14 = arith.constant 0 : index
    %15 = vector.load %arg5[%c0_12, %c0_13, %c0_14] : memref<3x1x128xf32, #tpu.memory_space<vmem>>, vector<1x1x128xf32>
    %16 = vector.shape_cast %15 : vector<1x1x128xf32> to vector<1x128xf32>
    %17 = vector.broadcast %16 : vector<1x128xf32> to vector<16x128xf32>
    %18 = arith.addf %14, %17 : vector<16x128xf32>
    %cst_15 = arith.constant 0.000000e+00 : f32
    %19 = vector.broadcast %cst_15 : f32 to vector<16x128xf32>
    %20 = arith.maximumf %18, %19 : vector<16x128xf32>
    %21 = arith.addf %0, %20 : vector<16x128xf32>
    %22 = arith.truncf %21 : vector<16x128xf32> to vector<16x128xbf16>
    %c1 = arith.constant 1 : index
    %c0_16 = arith.constant 0 : index
    %c0_17 = arith.constant 0 : index
    %23 = vector.load %arg2[%c1, %c0_16, %c0_17] : memref<3x128x128xbf16, #tpu.memory_space<vmem>>, vector<1x128x128xbf16>
    %24 = vector.shape_cast %23 : vector<1x128x128xbf16> to vector<128x128xbf16>
    %cst_18 = arith.constant dense<0.000000e+00> : vector<16x128xf32>
    %25 = tpu.matmul %22, %24, %cst_18 {dimension_numbers = #tpu.dot_dimension_numbers<[1], [0], [0], [1], [0, 0, 1, 1], [], []>} : vector<16x128xbf16>, vector<128x128xbf16>, vector<16x128xf32> -> vector<16x128xf32>
    %c1_19 = arith.constant 1 : index
    %c0_20 = arith.constant 0 : index
    %c0_21 = arith.constant 0 : index
    %26 = vector.load %arg3[%c1_19, %c0_20, %c0_21] : memref<3x1x128xf32, #tpu.memory_space<vmem>>, vector<1x1x128xf32>
    %27 = vector.shape_cast %26 : vector<1x1x128xf32> to vector<1x128xf32>
    %28 = vector.broadcast %27 : vector<1x128xf32> to vector<16x128xf32>
    %29 = arith.addf %25, %28 : vector<16x128xf32>
    %cst_22 = arith.constant 0.000000e+00 : f32
    %30 = vector.broadcast %cst_22 : f32 to vector<16x128xf32>
    %31 = arith.maximumf %29, %30 : vector<16x128xf32>
    %32 = arith.truncf %31 : vector<16x128xf32> to vector<16x128xbf16>
    %c1_23 = arith.constant 1 : index
    %c0_24 = arith.constant 0 : index
    %c0_25 = arith.constant 0 : index
    %33 = vector.load %arg4[%c1_23, %c0_24, %c0_25] : memref<3x128x128xbf16, #tpu.memory_space<vmem>>, vector<1x128x128xbf16>
    %34 = vector.shape_cast %33 : vector<1x128x128xbf16> to vector<128x128xbf16>
    %cst_26 = arith.constant dense<0.000000e+00> : vector<16x128xf32>
    %35 = tpu.matmul %32, %34, %cst_26 {dimension_numbers = #tpu.dot_dimension_numbers<[1], [0], [0], [1], [0, 0, 1, 1], [], []>} : vector<16x128xbf16>, vector<128x128xbf16>, vector<16x128xf32> -> vector<16x128xf32>
    %c1_27 = arith.constant 1 : index
    %c0_28 = arith.constant 0 : index
    %c0_29 = arith.constant 0 : index
    %36 = vector.load %arg5[%c1_27, %c0_28, %c0_29] : memref<3x1x128xf32, #tpu.memory_space<vmem>>, vector<1x1x128xf32>
    %37 = vector.shape_cast %36 : vector<1x1x128xf32> to vector<1x128xf32>
    %38 = vector.broadcast %37 : vector<1x128xf32> to vector<16x128xf32>
    %39 = arith.addf %35, %38 : vector<16x128xf32>
    %cst_30 = arith.constant 0.000000e+00 : f32
    %40 = vector.broadcast %cst_30 : f32 to vector<16x128xf32>
    %41 = arith.maximumf %39, %40 : vector<16x128xf32>
    %42 = arith.addf %21, %41 : vector<16x128xf32>
    %43 = arith.truncf %42 : vector<16x128xf32> to vector<16x128xbf16>
    %c2 = arith.constant 2 : index
    %c0_31 = arith.constant 0 : index
    %c0_32 = arith.constant 0 : index
    %44 = vector.load %arg2[%c2, %c0_31, %c0_32] : memref<3x128x128xbf16, #tpu.memory_space<vmem>>, vector<1x128x128xbf16>
    %45 = vector.shape_cast %44 : vector<1x128x128xbf16> to vector<128x128xbf16>
    %cst_33 = arith.constant dense<0.000000e+00> : vector<16x128xf32>
    %46 = tpu.matmul %43, %45, %cst_33 {dimension_numbers = #tpu.dot_dimension_numbers<[1], [0], [0], [1], [0, 0, 1, 1], [], []>} : vector<16x128xbf16>, vector<128x128xbf16>, vector<16x128xf32> -> vector<16x128xf32>
    %c2_34 = arith.constant 2 : index
    %c0_35 = arith.constant 0 : index
    %c0_36 = arith.constant 0 : index
    %47 = vector.load %arg3[%c2_34, %c0_35, %c0_36] : memref<3x1x128xf32, #tpu.memory_space<vmem>>, vector<1x1x128xf32>
    %48 = vector.shape_cast %47 : vector<1x1x128xf32> to vector<1x128xf32>
    %49 = vector.broadcast %48 : vector<1x128xf32> to vector<16x128xf32>
    %50 = arith.addf %46, %49 : vector<16x128xf32>
    %cst_37 = arith.constant 0.000000e+00 : f32
    %51 = vector.broadcast %cst_37 : f32 to vector<16x128xf32>
    %52 = arith.maximumf %50, %51 : vector<16x128xf32>
    %53 = arith.truncf %52 : vector<16x128xf32> to vector<16x128xbf16>
    %c2_38 = arith.constant 2 : index
    %c0_39 = arith.constant 0 : index
    %c0_40 = arith.constant 0 : index
    %54 = vector.load %arg4[%c2_38, %c0_39, %c0_40] : memref<3x128x128xbf16, #tpu.memory_space<vmem>>, vector<1x128x128xbf16>
    %55 = vector.shape_cast %54 : vector<1x128x128xbf16> to vector<128x128xbf16>
    %cst_41 = arith.constant dense<0.000000e+00> : vector<16x128xf32>
    %56 = tpu.matmul %53, %55, %cst_41 {dimension_numbers = #tpu.dot_dimension_numbers<[1], [0], [0], [1], [0, 0, 1, 1], [], []>} : vector<16x128xbf16>, vector<128x128xbf16>, vector<16x128xf32> -> vector<16x128xf32>
    %c2_42 = arith.constant 2 : index
    %c0_43 = arith.constant 0 : index
    %c0_44 = arith.constant 0 : index
    %57 = vector.load %arg5[%c2_42, %c0_43, %c0_44] : memref<3x1x128xf32, #tpu.memory_space<vmem>>, vector<1x1x128xf32>
    %58 = vector.shape_cast %57 : vector<1x1x128xf32> to vector<1x128xf32>
    %59 = vector.broadcast %58 : vector<1x128xf32> to vector<16x128xf32>
    %60 = arith.addf %56, %59 : vector<16x128xf32>
    %cst_45 = arith.constant 0.000000e+00 : f32
    %61 = vector.broadcast %cst_45 : f32 to vector<16x128xf32>
    %62 = arith.maximumf %60, %61 : vector<16x128xf32>
    %63 = arith.addf %42, %62 : vector<16x128xf32>
    %64 = arith.truncf %63 : vector<16x128xf32> to vector<16x128xbf16>
    %c0_46 = arith.constant 0 : index
    %c0_47 = arith.constant 0 : index
    %65 = vector.load %arg6[%c0_46, %c0_47] : memref<128x128xbf16, #tpu.memory_space<vmem>>, vector<128x128xbf16>
    %cst_48 = arith.constant dense<0.000000e+00> : vector<16x128xf32>
    %66 = tpu.matmul %64, %65, %cst_48 {dimension_numbers = #tpu.dot_dimension_numbers<[1], [0], [0], [1], [0, 0, 1, 1], [], []>} : vector<16x128xbf16>, vector<128x128xbf16>, vector<16x128xf32> -> vector<16x128xf32>
    %c0_49 = arith.constant 0 : index
    %c0_50 = arith.constant 0 : index
    %67 = vector.load %arg7[%c0_49, %c0_50] : memref<1x128xf32, #tpu.memory_space<vmem>>, vector<1x128xf32>
    %68 = vector.broadcast %67 : vector<1x128xf32> to vector<16x128xf32>
    %69 = arith.addf %66, %68 : vector<16x128xf32>
    %c0_51 = arith.constant 0 : index
    %c0_52 = arith.constant 0 : index
    %70 = vector.load %arg8[%c0_51, %c0_52] : memref<16x128xf32, #tpu.memory_space<vmem>>, vector<16x128xf32>
    tpu.vector_store %arg8[%c0_51, %c0_52], %69 {strides = array<i32>} : memref<16x128xf32, #tpu.memory_space<vmem>>, vector<16x128xf32>,
    return
  }
  func.func @transform_0(%arg0: i32) -> (i32, i32) {
    %c0_i32 = arith.constant 0 : i32
    %c0_i32_0 = arith.constant 0 : i32
    return %arg0, %c0_i32 : i32, i32
  }
  func.func @transform_1(%arg0: i32) -> (i32, i32, i32) {
    %c0_i32 = arith.constant 0 : i32
    %c0_i32_0 = arith.constant 0 : i32
    %c0_i32_1 = arith.constant 0 : i32
    %c0_i32_2 = arith.constant 0 : i32
    return %c0_i32, %c0_i32_0, %c0_i32_1 : i32, i32, i32
  }
  func.func @transform_2(%arg0: i32) -> (i32, i32, i32) {
    %c0_i32 = arith.constant 0 : i32
    %c0_i32_0 = arith.constant 0 : i32
    %c0_i32_1 = arith.constant 0 : i32
    %c0_i32_2 = arith.constant 0 : i32
    return %c0_i32, %c0_i32_0, %c0_i32_1 : i32, i32, i32
  }
  func.func @transform_3(%arg0: i32) -> (i32, i32, i32) {
    %c0_i32 = arith.constant 0 : i32
    %c0_i32_0 = arith.constant 0 : i32
    %c0_i32_1 = arith.constant 0 : i32
    %c0_i32_2 = arith.constant 0 : i32
    return %c0_i32, %c0_i32_0, %c0_i32_1 : i32, i32, i32
  }
  func.func @transform_4(%arg0: i32) -> (i32, i32, i32) {
    %c0_i32 = arith.constant 0 : i32
    %c0_i32_0 = arith.constant 0 : i32
    %c0_i32_1 = arith.constant 0 : i32
    %c0_i32_2 = arith.constant 0 : i32
    return %c0_i32, %c0_i32_0, %c0_i32_1 : i32, i32, i32
  }
  func.func @transform_5(%arg0: i32) -> (i32, i32) {
    %c0_i32 = arith.constant 0 : i32
    %c0_i32_0 = arith.constant 0 : i32
    %c0_i32_1 = arith.constant 0 : i32
    return %c0_i32, %c0_i32_0 : i32, i32
  }
  func.func @transform_6(%arg0: i32) -> (i32, i32) {
    %c0_i32 = arith.constant 0 : i32
    %c0_i32_0 = arith.constant 0 : i32
    %c0_i32_1 = arith.constant 0 : i32
    return %c0_i32, %c0_i32_0 : i32, i32
  }
  func.func @transform_7(%arg0: i32) -> (i32, i32) {
    %c0_i32 = arith.constant 0 : i32
    %c0_i32_0 = arith.constant 0 : i32
    return %arg0, %c0_i32 : i32, i32
  }
}

</mosaic_0001>

<llo_original>
// kernel: _resnet_forward_impl.1
$region0: #{_resnet_forward_impl.1}
  #allocation0 [shape = 'u32[]', space=smem, size = 0x4, offset = 0x4, fixed_abs, tag = 'smem constant byte address 0x4 - core index']
  #allocation1 [shape = 'u32[144,128]{1,0:T(1,128)}', space=vmem, size = 0x12000, scoped, tag = 'internal scratch']
  %s0 = inlined_call_operand.vmem [shape: f32[16,128], index: 0, kind: input, shape index: {}]
  %s1 = inlined_call_operand.hbm [shape: bf16[3,128,128], index: 1, kind: input, shape index: {}]
  %s2 = inlined_call_operand.vmem [shape: f32[3,1,128], index: 2, kind: input, shape index: {}]
  %s3 = inlined_call_operand.hbm [shape: bf16[3,128,128], index: 3, kind: input, shape index: {}]
  %s4 = inlined_call_operand.vmem [shape: f32[3,1,128], index: 4, kind: input, shape index: {}]
  %s5 = inlined_call_operand.hbm [shape: bf16[128,128], index: 5, kind: input, shape index: {}]
  %s6 = inlined_call_operand.vmem [shape: f32[1,128], index: 6, kind: input, shape index: {}]
  %s7 = inlined_call_operand.vmem [shape: f32[16,128], index: 7, kind: output, shape index: {}]
  %s8 = sld [smem:[#allocation0]]
  $region50: #{_resnet_forward_impl.1} parent=0
    _
  %s10 = ssub.s32 1, %s8
  %s11 = scalar_select 0, %s10, %s8
  $region1: #{_resnet_forward_impl.1} parent=0
    #allocation2 [shape = 'u8[98304]{0}', space=vmem, size = 0x18000, scoped, tag = 'input window, operand 1, single buffered']
    #allocation3 [shape = 's32[1]{0}', space=sflag, size = 0x4, scoped, tag = 'scoped memory for _resnet_forward_impl.1']
    #allocation4 [shape = 'u8[98304]{0}', space=vmem, size = 0x18000, scoped, tag = 'input window, operand 3, single buffered']
    #allocation5 [shape = 's32[1]{0}', space=sflag, size = 0x4, scoped, tag = 'scoped memory for _resnet_forward_impl.1']
    #allocation6 [shape = 'u8[32768]{0}', space=vmem, size = 0x8000, scoped, tag = 'input window, operand 5, single buffered']
    %12 = vsyncpa [#allocation3], 0
    %13 = vsyncpa [#allocation5], 0
    // Predicated region
    $region2: #{_resnet_forward_impl.1} parent=1 // pred_check
      _
    $region3: #{_resnet_forward_impl.1} parent=1 // pred_check_branch
      %15 = sbr.rel (0) target = $region5
    $region4: #{_resnet_forward_impl.1} parent=1 // pred_region
      _
    $region5: #{_resnet_forward_impl.1} parent=1 // pred_fallthru
      _
    // Predicated region
    $region6: #{_resnet_forward_impl.1} parent=1 // pred_check
      _
    $region7: #{_resnet_forward_impl.1} parent=1 // pred_check_branch
      %17 = sbr.rel (0) target = $region9
    $region8: #{_resnet_forward_impl.1} parent=1 // pred_region
      %s19 = ssub.s32 3072, 3072
      %20 = vsyncadd [#allocation3], %s19
      %s21 = sshll.u32 [#allocation2], 4
      %s22 = int_to_ptr.vmem [resolvable:$true] %s21
      %27 = dma.hbm_to_vmem [thread:$0]  %s1, 3072, %s22, [#allocation3], 64, 64, 4
    $region9: #{_resnet_forward_impl.1} parent=1 // pred_fallthru
      _
    // Predicated region
    $region10: #{_resnet_forward_impl.1} parent=1 // pred_check
      _
    $region11: #{_resnet_forward_impl.1} parent=1 // pred_check_branch
      %29 = sbr.rel (0) target = $region13
    $region12: #{_resnet_forward_impl.1} parent=1 // pred_region
      _
    $region13: #{_resnet_forward_impl.1} parent=1 // pred_fallthru
      _
    // Predicated region
    $region14: #{_resnet_forward_impl.1} parent=1 // pred_check
      _
    $region15: #{_resnet_forward_impl.1} parent=1 // pred_check_branch
      %31 = sbr.rel (0) target = $region17
    $region16: #{_resnet_forward_impl.1} parent=1 // pred_region
      %s33 = ssub.s32 3072, 3072
      %34 = vsyncadd [#allocation5], %s33
      %s35 = sshll.u32 [#allocation4], 4
      %s36 = int_to_ptr.vmem [resolvable:$true] %s35
      %41 = dma.hbm_to_vmem [thread:$0]  %s3, 3072, %s36, [#allocation5], 64, 64, 4
    $region17: #{_resnet_forward_impl.1} parent=1 // pred_fallthru
      _
    // Predicated region
    $region18: #{_resnet_forward_impl.1} parent=1 // pred_check
      _
    $region19: #{_resnet_forward_impl.1} parent=1 // pred_check_branch
      %43 = sbr.rel (0) target = $region21
    $region20: #{_resnet_forward_impl.1} parent=1 // pred_region
      _
    $region21: #{_resnet_forward_impl.1} parent=1 // pred_fallthru
      _
    // Predicated region
    $region22: #{_resnet_forward_impl.1} parent=1 // pred_check
      _
    $region23: #{_resnet_forward_impl.1} parent=1 // pred_check_branch
      %45 = sbr.rel (0) target = $region25
    $region24: #{_resnet_forward_impl.1} parent=1 // pred_region
      %s47 = ssub.s32 1024, 1024
      %48 = vsyncadd [#allocation5], %s47
      %s49 = sshll.u32 [#allocation6], 4
      %s50 = int_to_ptr.vmem [resolvable:$true] %s49
      %55 = dma.hbm_to_vmem [thread:$0]  %s5, 1024, %s50, [#allocation5], 64, 64, 4
    $region25: #{_resnet_forward_impl.1} parent=1 // pred_fallthru
      _
    // Predicated region
    $region26: #{_resnet_forward_impl.1} parent=1 // pred_check
      _
    $region27: #{_resnet_forward_impl.1} parent=1 // pred_check_branch
      %57 = sbr.rel (0) target = $region29
    $region28: #{_resnet_forward_impl.1} parent=1 // pred_region
      _
    $region29: #{_resnet_forward_impl.1} parent=1 // pred_fallthru
      _
    // Predicated region
    $region30: #{_resnet_forward_impl.1} parent=1 // pred_check
      _
    $region31: #{_resnet_forward_impl.1} parent=1 // pred_check_branch
      %59 = sbr.rel (0) target = $region33
    $region32: #{_resnet_forward_impl.1} parent=1 // pred_region
      %60 = dma.done [#allocation3], 3072
    $region33: #{_resnet_forward_impl.1} parent=1 // pred_fallthru
      _
    // Predicated region
    $region34: #{_resnet_forward_impl.1} parent=1 // pred_check
      _
    $region35: #{_resnet_forward_impl.1} parent=1 // pred_check_branch
      %62 = sbr.rel (0) target = $region37
    $region36: #{_resnet_forward_impl.1} parent=1 // pred_region
      %63 = dma.done [#allocation5], 3072
    $region37: #{_resnet_forward_impl.1} parent=1 // pred_fallthru
      _
    // Predicated region
    $region38: #{_resnet_forward_impl.1} parent=1 // pred_check
      _
    $region39: #{_resnet_forward_impl.1} parent=1 // pred_check_branch
      %65 = sbr.rel (0) target = $region41
    $region40: #{_resnet_forward_impl.1} parent=1 // pred_region
      %66 = dma.done [#allocation5], 1024
    $region41: #{_resnet_forward_impl.1} parent=1 // pred_fallthru
      _
    %v68 = vld [vmem:[%s0] sm:$0xff]
    %v69 = vld [vmem:[%s0 + $0x8] sm:$0xff]
    %v70 = vpack.c.bf16 %v69, %v68
    %v71 = vld [vmem:[#allocation2] sm:$0xf]
    %v72 = vld [vmem:[#allocation2 + $0x4] sm:$0xf]
    %v73 = vld [vmem:[#allocation2 + $0x8] sm:$0xf]
    %v74 = vld [vmem:[#allocation2 + $0xc] sm:$0xf]
    %v75 = vld [vmem:[#allocation2 + $0x10] sm:$0xf]
    %v76 = vld [vmem:[#allocation2 + $0x14] sm:$0xf]
    %v77 = vld [vmem:[#allocation2 + $0x18] sm:$0xf]
    %v78 = vld [vmem:[#allocation2 + $0x1c] sm:$0xf]
    %v79 = vld [vmem:[#allocation2 + $0x20] sm:$0xf]
    %v80 = vld [vmem:[#allocation2 + $0x24] sm:$0xf]
    %v81 = vld [vmem:[#allocation2 + $0x28] sm:$0xf]
    %v82 = vld [vmem:[#allocation2 + $0x2c] sm:$0xf]
    %v83 = vld [vmem:[#allocation2 + $0x30] sm:$0xf]
    %v84 = vld [vmem:[#allocation2 + $0x34] sm:$0xf]
    %v85 = vld [vmem:[#allocation2 + $0x38] sm:$0xf]
    %v86 = vld [vmem:[#allocation2 + $0x3c] sm:$0xf]
    %v87 = vld [vmem:[%s2] sm:$0x1]
    %v89 = vlaneseq
    %v90 = vshrl.u32 %v89, 7
    %v91 = vsub.s32 0, %v90
    %v92 = vrot.slane %v87, %v91
    %v110 = vunpack.c.l.b16 %v71
    %v111 = vunpack.c.l.b16 %v72
    %v112 = vunpack.c.l.b16 %v73
    %v113 = vunpack.c.l.b16 %v74
    %v114 = vunpack.c.l.b16 %v75
    %v115 = vunpack.c.l.b16 %v76
    %v116 = vunpack.c.l.b16 %v77
    %v117 = vunpack.c.l.b16 %v78
    %v118 = vunpack.c.l.b16 %v79
    %v119 = vunpack.c.l.b16 %v80
    %v120 = vunpack.c.l.b16 %v81
    %v121 = vunpack.c.l.b16 %v82
    %v122 = vunpack.c.l.b16 %v83
    %v123 = vunpack.c.l.b16 %v84
    %v124 = vunpack.c.l.b16 %v85
    %v125 = vunpack.c.l.b16 %v86
    %v126 = vpack.c.b16 %v111, %v110
    %v127 = vpack.c.b16 %v113, %v112
    %v128 = vpack.c.b16 %v115, %v114
    %v129 = vpack.c.b16 %v117, %v116
    %v130 = vpack.c.b16 %v119, %v118
    %v131 = vpack.c.b16 %v121, %v120
    %v132 = vpack.c.b16 %v123, %v122
    %v133 = vpack.c.b16 %v125, %v124
    %142 = vmatprep.subr.bf16.mxu0 0
    %143 = vmatpush1.bf16.msra.mxu0 %v133
    %144 = vmatprep.subr.bf16.mxu0 0
    %145 = vmatpush1.bf16.msra.mxu0 %v132
    %146 = vmatprep.subr.bf16.mxu0 0
    %147 = vmatpush1.bf16.msra.mxu0 %v131
    %148 = vmatprep.subr.bf16.mxu0 0
    %149 = vmatpush1.bf16.msra.mxu0 %v130
    %150 = vmatprep.subr.bf16.mxu0 0
    %151 = vmatpush1.bf16.msra.mxu0 %v129
    %152 = vmatprep.subr.bf16.mxu0 0
    %153 = vmatpush1.bf16.msra.mxu0 %v128
    %154 = vmatprep.subr.bf16.mxu0 0
    %155 = vmatpush1.bf16.msra.mxu0 %v127
    %156 = vmatprep.subr.bf16.mxu0 0
    %157 = vmatpush1.bf16.msra.mxu0 %v126
    %158 = vmatprep.subr.bf16.mxu0 0
    %159 = vmatpush2.bf16.msra.mxu0 0
    %160 = vmatprep.subr.bf16.mxu0 0
    %161 = vmatpush2.bf16.msra.mxu0 0
    %162 = vmatprep.subr.bf16.mxu0 0
    %163 = vmatpush2.bf16.msra.mxu0 0
    %164 = vmatprep.subr.bf16.mxu0 0
    %165 = vmatpush2.bf16.msra.mxu0 0
    %166 = vmatprep.subr.bf16.mxu0 0
    %167 = vmatpush2.bf16.msra.mxu0 0
    %168 = vmatprep.subr.bf16.mxu0 0
    %169 = vmatpush2.bf16.msra.mxu0 0
    %170 = vmatprep.subr.bf16.mxu0 0
    %171 = vmatpush2.bf16.msra.mxu0 0
    %172 = vmatprep.subr.bf16.mxu0 0
    %173 = vmatpush2.bf16.msra.mxu0 0
    %174 = vmatprep.mubr.bf16.mxu0 0
    %175 = vmatmul.mubr.bf16.gmra.mxu0 %v70
    %v176 = vpop.f32.mrf.mxu0
    %v177 = vadd.f32 %v92, %v176
    %v178 = vpop.f32.mrf.mxu0
    %v179 = vpop.f32.mrf.mxu0
    %v180 = vadd.f32 %v92, %v179
    %v181 = vpop.f32.mrf.mxu0
    %182 = vdwg.mxu0
    %v183 = vmax.f32 %v177, 0.0
    %v184 = vmax.f32 %v180, 0.0
    %v185 = vpack.c.bf16 %v184, %v183
    %v186 = vld [vmem:[#allocation4] sm:$0xf]
    %v187 = vld [vmem:[#allocation4 + $0x4] sm:$0xf]
    %v188 = vld [vmem:[#allocation4 + $0x8] sm:$0xf]
    %v189 = vld [vmem:[#allocation4 + $0xc] sm:$0xf]
    %v190 = vld [vmem:[#allocation4 + $0x10] sm:$0xf]
    %v191 = vld [vmem:[#allocation4 + $0x14] sm:$0xf]
    %v192 = vld [vmem:[#allocation4 + $0x18] sm:$0xf]
    %v193 = vld [vmem:[#allocation4 + $0x1c] sm:$0xf]
    %v194 = vld [vmem:[#allocation4 + $0x20] sm:$0xf]
    %v195 = vld [vmem:[#allocation4 + $0x24] sm:$0xf]
    %v196 = vld [vmem:[#allocation4 + $0x28] sm:$0xf]
    %v197 = vld [vmem:[#allocation4 + $0x2c] sm:$0xf]
    %v198 = vld [vmem:[#allocation4 + $0x30] sm:$0xf]
    %v199 = vld [vmem:[#allocation4 + $0x34] sm:$0xf]
    %v200 = vld [vmem:[#allocation4 + $0x38] sm:$0xf]
    %v201 = vld [vmem:[#allocation4 + $0x3c] sm:$0xf]
    %v202 = vld [vmem:[%s4] sm:$0x1]
    %v204 = vlaneseq
    %v205 = vshrl.u32 %v204, 7
    %v206 = vsub.s32 0, %v205
    %v207 = vrot.slane %v202, %v206
    %v225 = vunpack.c.l.b16 %v186
    %v226 = vunpack.c.l.b16 %v187
    %v227 = vunpack.c.l.b16 %v188
    %v228 = vunpack.c.l.b16 %v189
    %v229 = vunpack.c.l.b16 %v190
    %v230 = vunpack.c.l.b16 %v191
    %v231 = vunpack.c.l.b16 %v192
    %v232 = vunpack.c.l.b16 %v193
    %v233 = vunpack.c.l.b16 %v194
    %v234 = vunpack.c.l.b16 %v195
    %v235 = vunpack.c.l.b16 %v196
    %v236 = vunpack.c.l.b16 %v197
    %v237 = vunpack.c.l.b16 %v198
    %v238 = vunpack.c.l.b16 %v199
    %v239 = vunpack.c.l.b16 %v200
    %v240 = vunpack.c.l.b16 %v201
    %v241 = vpack.c.b16 %v226, %v225
    %v242 = vpack.c.b16 %v228, %v227
    %v243 = vpack.c.b16 %v230, %v229
    %v244 = vpack.c.b16 %v232, %v231
    %v245 = vpack.c.b16 %v234, %v233
    %v246 = vpack.c.b16 %v236, %v235
    %v247 = vpack.c.b16 %v238, %v237
    %v248 = vpack.c.b16 %v240, %v239
    %257 = vmatprep.subr.bf16.mxu0 0
    %258 = vmatpush1.bf16.msra.mxu0 %v248
    %259 = vmatprep.subr.bf16.mxu0 0
    %260 = vmatpush1.bf16.msra.mxu0 %v247
    %261 = vmatprep.subr.bf16.mxu0 0
    %262 = vmatpush1.bf16.msra.mxu0 %v246
    %263 = vmatprep.subr.bf16.mxu0 0
    %264 = vmatpush1.bf16.msra.mxu0 %v245
    %265 = vmatprep.subr.bf16.mxu0 0
    %266 = vmatpush1.bf16.msra.mxu0 %v244
    %267 = vmatprep.subr.bf16.mxu0 0
    %268 = vmatpush1.bf16.msra.mxu0 %v243
    %269 = vmatprep.subr.bf16.mxu0 0
    %270 = vmatpush1.bf16.msra.mxu0 %v242
    %271 = vmatprep.subr.bf16.mxu0 0
    %272 = vmatpush1.bf16.msra.mxu0 %v241
    %273 = vmatprep.subr.bf16.mxu0 0
    %274 = vmatpush2.bf16.msra.mxu0 0
    %275 = vmatprep.subr.bf16.mxu0 0
    %276 = vmatpush2.bf16.msra.mxu0 0
    %277 = vmatprep.subr.bf16.mxu0 0
    %278 = vmatpush2.bf16.msra.mxu0 0
    %279 = vmatprep.subr.bf16.mxu0 0
    %280 = vmatpush2.bf16.msra.mxu0 0
    %281 = vmatprep.subr.bf16.mxu0 0
    %282 = vmatpush2.bf16.msra.mxu0 0
    %283 = vmatprep.subr.bf16.mxu0 0
    %284 = vmatpush2.bf16.msra.mxu0 0
    %285 = vmatprep.subr.bf16.mxu0 0
    %286 = vmatpush2.bf16.msra.mxu0 0
    %287 = vmatprep.subr.bf16.mxu0 0
    %288 = vmatpush2.bf16.msra.mxu0 0
    %289 = vmatprep.mubr.bf16.mxu0 0
    %290 = vmatmul.mubr.bf16.gmra.mxu0 %v185
    %v291 = vpop.f32.mrf.mxu0
    %v292 = vadd.f32 %v207, %v291
    %v293 = vpop.f32.mrf.mxu0
    %v294 = vpop.f32.mrf.mxu0
    %v295 = vadd.f32 %v207, %v294
    %v296 = vpop.f32.mrf.mxu0
    %297 = vdwg.mxu0
    %v298 = vmax.f32 %v292, 0.0
    %v299 = vmax.f32 %v295, 0.0
    %v300 = vadd.f32 %v68, %v298
    %v301 = vadd.f32 %v69, %v299
    %v302 = vpack.c.bf16 %v301, %v300
    %s303 = scalar_lea.vmem [#allocation2], 64
    %v304 = vld [vmem:[%s303] sm:$0xf]
    %v305 = vld [vmem:[%s303 + $0x4] sm:$0xf]
    %v306 = vld [vmem:[%s303 + $0x8] sm:$0xf]
    %v307 = vld [vmem:[%s303 + $0xc] sm:$0xf]
    %v308 = vld [vmem:[%s303 + $0x10] sm:$0xf]
    %v309 = vld [vmem:[%s303 + $0x14] sm:$0xf]
    %v310 = vld [vmem:[%s303 + $0x18] sm:$0xf]
    %v311 = vld [vmem:[%s303 + $0x1c] sm:$0xf]
    %v312 = vld [vmem:[%s303 + $0x20] sm:$0xf]
    %v313 = vld [vmem:[%s303 + $0x24] sm:$0xf]
    %v314 = vld [vmem:[%s303 + $0x28] sm:$0xf]
    %v315 = vld [vmem:[%s303 + $0x2c] sm:$0xf]
    %v316 = vld [vmem:[%s303 + $0x30] sm:$0xf]
    %v317 = vld [vmem:[%s303 + $0x34] sm:$0xf]
    %v318 = vld [vmem:[%s303 + $0x38] sm:$0xf]
    %v319 = vld [vmem:[%s303 + $0x3c] sm:$0xf]
    %s320 = scalar_lea.vmem %s2, 1
    %v321 = vld [vmem:[%s320] sm:$0x1]
    %v323 = vlaneseq
    %v324 = vshrl.u32 %v323, 7
    %v325 = vsub.s32 0, %v324
    %v326 = vrot.slane %v321, %v325
    %v344 = vunpack.c.l.b16 %v304
    %v345 = vunpack.c.l.b16 %v305
    %v346 = vunpack.c.l.b16 %v306
    %v347 = vunpack.c.l.b16 %v307
    %v348 = vunpack.c.l.b16 %v308
    %v349 = vunpack.c.l.b16 %v309
    %v350 = vunpack.c.l.b16 %v310
    %v351 = vunpack.c.l.b16 %v311
    %v352 = vunpack.c.l.b16 %v312
    %v353 = vunpack.c.l.b16 %v313
    %v354 = vunpack.c.l.b16 %v314
    %v355 = vunpack.c.l.b16 %v315
    %v356 = vunpack.c.l.b16 %v316
    %v357 = vunpack.c.l.b16 %v317
    %v358 = vunpack.c.l.b16 %v318
    %v359 = vunpack.c.l.b16 %v319
    %v360 = vpack.c.b16 %v345, %v344
    %v361 = vpack.c.b16 %v347, %v346
    %v362 = vpack.c.b16 %v349, %v348
    %v363 = vpack.c.b16 %v351, %v350
    %v364 = vpack.c.b16 %v353, %v352
    %v365 = vpack.c.b16 %v355, %v354
    %v366 = vpack.c.b16 %v357, %v356
    %v367 = vpack.c.b16 %v359, %v358
    %376 = vmatprep.subr.bf16.mxu0 0
    %377 = vmatpush1.bf16.msra.mxu0 %v367
    %378 = vmatprep.subr.bf16.mxu0 0
    %379 = vmatpush1.bf16.msra.mxu0 %v366
    %380 = vmatprep.subr.bf16.mxu0 0
    %381 = vmatpush1.bf16.msra.mxu0 %v365
    %382 = vmatprep.subr.bf16.mxu0 0
    %383 = vmatpush1.bf16.msra.mxu0 %v364
    %384 = vmatprep.subr.bf16.mxu0 0
    %385 = vmatpush1.bf16.msra.mxu0 %v363
    %386 = vmatprep.subr.bf16.mxu0 0
    %387 = vmatpush1.bf16.msra.mxu0 %v362
    %388 = vmatprep.subr.bf16.mxu0 0
    %389 = vmatpush1.bf16.msra.mxu0 %v361
    %390 = vmatprep.subr.bf16.mxu0 0
    %391 = vmatpush1.bf16.msra.mxu0 %v360
    %392 = vmatprep.subr.bf16.mxu0 0
    %393 = vmatpush2.bf16.msra.mxu0 0
    %394 = vmatprep.subr.bf16.mxu0 0
    %395 = vmatpush2.bf16.msra.mxu0 0
    %396 = vmatprep.subr.bf16.mxu0 0
    %397 = vmatpush2.bf16.msra.mxu0 0
    %398 = vmatprep.subr.bf16.mxu0 0
    %399 = vmatpush2.bf16.msra.mxu0 0
    %400 = vmatprep.subr.bf16.mxu0 0
    %401 = vmatpush2.bf16.msra.mxu0 0
    %402 = vmatprep.subr.bf16.mxu0 0
    %403 = vmatpush2.bf16.msra.mxu0 0
    %404 = vmatprep.subr.bf16.mxu0 0
    %405 = vmatpush2.bf16.msra.mxu0 0
    %406 = vmatprep.subr.bf16.mxu0 0
    %407 = vmatpush2.bf16.msra.mxu0 0
    %408 = vmatprep.mubr.bf16.mxu0 0
    %409 = vmatmul.mubr.bf16.gmra.mxu0 %v302
    %v410 = vpop.f32.mrf.mxu0
    %v411 = vadd.f32 %v326, %v410
    %v412 = vpop.f32.mrf.mxu0
    %v413 = vpop.f32.mrf.mxu0
    %v414 = vadd.f32 %v326, %v413
    %v415 = vpop.f32.mrf.mxu0
    %416 = vdwg.mxu0
    %v417 = vmax.f32 %v411, 0.0
    %v418 = vmax.f32 %v414, 0.0
    %v419 = vpack.c.bf16 %v418, %v417
    %s420 = scalar_lea.vmem [#allocation4], 64
    %v421 = vld [vmem:[%s420] sm:$0xf]
    %v422 = vld [vmem:[%s420 + $0x4] sm:$0xf]
    %v423 = vld [vmem:[%s420 + $0x8] sm:$0xf]
    %v424 = vld [vmem:[%s420 + $0xc] sm:$0xf]
    %v425 = vld [vmem:[%s420 + $0x10] sm:$0xf]
    %v426 = vld [vmem:[%s420 + $0x14] sm:$0xf]
    %v427 = vld [vmem:[%s420 + $0x18] sm:$0xf]
    %v428 = vld [vmem:[%s420 + $0x1c] sm:$0xf]
    %v429 = vld [vmem:[%s420 + $0x20] sm:$0xf]
    %v430 = vld [vmem:[%s420 + $0x24] sm:$0xf]
    %v431 = vld [vmem:[%s420 + $0x28] sm:$0xf]
    %v432 = vld [vmem:[%s420 + $0x2c] sm:$0xf]
    %v433 = vld [vmem:[%s420 + $0x30] sm:$0xf]
    %v434 = vld [vmem:[%s420 + $0x34] sm:$0xf]
    %v435 = vld [vmem:[%s420 + $0x38] sm:$0xf]
    %v436 = vld [vmem:[%s420 + $0x3c] sm:$0xf]
    %s437 = scalar_lea.vmem %s4, 1
    %v438 = vld [vmem:[%s437] sm:$0x1]
    %v440 = vlaneseq
    %v441 = vshrl.u32 %v440, 7
    %v442 = vsub.s32 0, %v441
    %v443 = vrot.slane %v438, %v442
    %v461 = vunpack.c.l.b16 %v421
    %v462 = vunpack.c.l.b16 %v422
    %v463 = vunpack.c.l.b16 %v423
    %v464 = vunpack.c.l.b16 %v424
    %v465 = vunpack.c.l.b16 %v425
    %v466 = vunpack.c.l.b16 %v426
    %v467 = vunpack.c.l.b16 %v427
    %v468 = vunpack.c.l.b16 %v428
    %v469 = vunpack.c.l.b16 %v429
    %v470 = vunpack.c.l.b16 %v430
    %v471 = vunpack.c.l.b16 %v431
    %v472 = vunpack.c.l.b16 %v432
    %v473 = vunpack.c.l.b16 %v433
    %v474 = vunpack.c.l.b16 %v434
    %v475 = vunpack.c.l.b16 %v435
    %v476 = vunpack.c.l.b16 %v436
    %v477 = vpack.c.b16 %v462, %v461
    %v478 = vpack.c.b16 %v464, %v463
    %v479 = vpack.c.b16 %v466, %v465
    %v480 = vpack.c.b16 %v468, %v467
    %v481 = vpack.c.b16 %v470, %v469
    %v482 = vpack.c.b16 %v472, %v471
    %v483 = vpack.c.b16 %v474, %v473
    %v484 = vpack.c.b16 %v476, %v475
    %493 = vmatprep.subr.bf16.mxu0 0
    %494 = vmatpush1.bf16.msra.mxu0 %v484
    %495 = vmatprep.subr.bf16.mxu0 0
    %496 = vmatpush1.bf16.msra.mxu0 %v483
    %497 = vmatprep.subr.bf16.mxu0 0
    %498 = vmatpush1.bf16.msra.mxu0 %v482
    %499 = vmatprep.subr.bf16.mxu0 0
    %500 = vmatpush1.bf16.msra.mxu0 %v481
    %501 = vmatprep.subr.bf16.mxu0 0
    %502 = vmatpush1.bf16.msra.mxu0 %v480
    %503 = vmatprep.subr.bf16.mxu0 0
    %504 = vmatpush1.bf16.msra.mxu0 %v479
    %505 = vmatprep.subr.bf16.mxu0 0
    %506 = vmatpush1.bf16.msra.mxu0 %v478
    %507 = vmatprep.subr.bf16.mxu0 0
    %508 = vmatpush1.bf16.msra.mxu0 %v477
    %509 = vmatprep.subr.bf16.mxu0 0
    %510 = vmatpush2.bf16.msra.mxu0 0
    %511 = vmatprep.subr.bf16.mxu0 0
    %512 = vmatpush2.bf16.msra.mxu0 0
    %513 = vmatprep.subr.bf16.mxu0 0
    %514 = vmatpush2.bf16.msra.mxu0 0
    %515 = vmatprep.subr.bf16.mxu0 0
    %516 = vmatpush2.bf16.msra.mxu0 0
    %517 = vmatprep.subr.bf16.mxu0 0
    %518 = vmatpush2.bf16.msra.mxu0 0
    %519 = vmatprep.subr.bf16.mxu0 0
    %520 = vmatpush2.bf16.msra.mxu0 0
    %521 = vmatprep.subr.bf16.mxu0 0
    %522 = vmatpush2.bf16.msra.mxu0 0
    %523 = vmatprep.subr.bf16.mxu0 0
    %524 = vmatpush2.bf16.msra.mxu0 0
    %525 = vmatprep.mubr.bf16.mxu0 0
    %526 = vmatmul.mubr.bf16.gmra.mxu0 %v419
    %v527 = vpop.f32.mrf.mxu0
    %v528 = vadd.f32 %v443, %v527
    %v529 = vpop.f32.mrf.mxu0
    %v530 = vpop.f32.mrf.mxu0
    %v531 = vadd.f32 %v443, %v530
    %v532 = vpop.f32.mrf.mxu0
    %533 = vdwg.mxu0
    %v534 = vmax.f32 %v528, 0.0
    %v535 = vmax.f32 %v531, 0.0
    %v536 = vadd.f32 %v300, %v534
    %v537 = vadd.f32 %v301, %v535
    %v538 = vpack.c.bf16 %v537, %v536
    %s539 = scalar_lea.vmem [#allocation2], 128
    %v540 = vld [vmem:[%s539] sm:$0xf]
    %v541 = vld [vmem:[%s539 + $0x4] sm:$0xf]
    %v542 = vld [vmem:[%s539 + $0x8] sm:$0xf]
    %v543 = vld [vmem:[%s539 + $0xc] sm:$0xf]
    %v544 = vld [vmem:[%s539 + $0x10] sm:$0xf]
    %v545 = vld [vmem:[%s539 + $0x14] sm:$0xf]
    %v546 = vld [vmem:[%s539 + $0x18] sm:$0xf]
    %v547 = vld [vmem:[%s539 + $0x1c] sm:$0xf]
    %v548 = vld [vmem:[%s539 + $0x20] sm:$0xf]
    %v549 = vld [vmem:[%s539 + $0x24] sm:$0xf]
    %v550 = vld [vmem:[%s539 + $0x28] sm:$0xf]
    %v551 = vld [vmem:[%s539 + $0x2c] sm:$0xf]
    %v552 = vld [vmem:[%s539 + $0x30] sm:$0xf]
    %v553 = vld [vmem:[%s539 + $0x34] sm:$0xf]
    %v554 = vld [vmem:[%s539 + $0x38] sm:$0xf]
    %v555 = vld [vmem:[%s539 + $0x3c] sm:$0xf]
    %s556 = scalar_lea.vmem %s2, 2
    %v557 = vld [vmem:[%s556] sm:$0x1]
    %v559 = vlaneseq
    %v560 = vshrl.u32 %v559, 7
    %v561 = vsub.s32 0, %v560
    %v562 = vrot.slane %v557, %v561
    %v580 = vunpack.c.l.b16 %v540
    %v581 = vunpack.c.l.b16 %v541
    %v582 = vunpack.c.l.b16 %v542
    %v583 = vunpack.c.l.b16 %v543
    %v584 = vunpack.c.l.b16 %v544
    %v585 = vunpack.c.l.b16 %v545
    %v586 = vunpack.c.l.b16 %v546
    %v587 = vunpack.c.l.b16 %v547
    %v588 = vunpack.c.l.b16 %v548
    %v589 = vunpack.c.l.b16 %v549
    %v590 = vunpack.c.l.b16 %v550
    %v591 = vunpack.c.l.b16 %v551
    %v592 = vunpack.c.l.b16 %v552
    %v593 = vunpack.c.l.b16 %v553
    %v594 = vunpack.c.l.b16 %v554
    %v595 = vunpack.c.l.b16 %v555
    %v596 = vpack.c.b16 %v581, %v580
    %v597 = vpack.c.b16 %v583, %v582
    %v598 = vpack.c.b16 %v585, %v584
    %v599 = vpack.c.b16 %v587, %v586
    %v600 = vpack.c.b16 %v589, %v588
    %v601 = vpack.c.b16 %v591, %v590
    %v602 = vpack.c.b16 %v593, %v592
    %v603 = vpack.c.b16 %v595, %v594
    %612 = vmatprep.subr.bf16.mxu0 0
    %613 = vmatpush1.bf16.msra.mxu0 %v603
    %614 = vmatprep.subr.bf16.mxu0 0
    %615 = vmatpush1.bf16.msra.mxu0 %v602
    %616 = vmatprep.subr.bf16.mxu0 0
    %617 = vmatpush1.bf16.msra.mxu0 %v601
    %618 = vmatprep.subr.bf16.mxu0 0
    %619 = vmatpush1.bf16.msra.mxu0 %v600
    %620 = vmatprep.subr.bf16.mxu0 0
    %621 = vmatpush1.bf16.msra.mxu0 %v599
    %622 = vmatprep.subr.bf16.mxu0 0
    %623 = vmatpush1.bf16.msra.mxu0 %v598
    %624 = vmatprep.subr.bf16.mxu0 0
    %625 = vmatpush1.bf16.msra.mxu0 %v597
    %626 = vmatprep.subr.bf16.mxu0 0
    %627 = vmatpush1.bf16.msra.mxu0 %v596
    %628 = vmatprep.subr.bf16.mxu0 0
    %629 = vmatpush2.bf16.msra.mxu0 0
    %630 = vmatprep.subr.bf16.mxu0 0
    %631 = vmatpush2.bf16.msra.mxu0 0
    %632 = vmatprep.subr.bf16.mxu0 0
    %633 = vmatpush2.bf16.msra.mxu0 0
    %634 = vmatprep.subr.bf16.mxu0 0
    %635 = vmatpush2.bf16.msra.mxu0 0
    %636 = vmatprep.subr.bf16.mxu0 0
    %637 = vmatpush2.bf16.msra.mxu0 0
    %638 = vmatprep.subr.bf16.mxu0 0
    %639 = vmatpush2.bf16.msra.mxu0 0
    %640 = vmatprep.subr.bf16.mxu0 0
    %641 = vmatpush2.bf16.msra.mxu0 0
    %642 = vmatprep.subr.bf16.mxu0 0
    %643 = vmatpush2.bf16.msra.mxu0 0
    %644 = vmatprep.mubr.bf16.mxu0 0
    %645 = vmatmul.mubr.bf16.gmra.mxu0 %v538
    %v646 = vpop.f32.mrf.mxu0
    %v647 = vadd.f32 %v562, %v646
    %v648 = vpop.f32.mrf.mxu0
    %v649 = vpop.f32.mrf.mxu0
    %v650 = vadd.f32 %v562, %v649
    %v651 = vpop.f32.mrf.mxu0
    %652 = vdwg.mxu0
    %v653 = vmax.f32 %v647, 0.0
    %v654 = vmax.f32 %v650, 0.0
    %v655 = vpack.c.bf16 %v654, %v653
    %s656 = scalar_lea.vmem [#allocation4], 128
    %v657 = vld [vmem:[%s656] sm:$0xf]
    %v658 = vld [vmem:[%s656 + $0x4] sm:$0xf]
    %v659 = vld [vmem:[%s656 + $0x8] sm:$0xf]
    %v660 = vld [vmem:[%s656 + $0xc] sm:$0xf]
    %v661 = vld [vmem:[%s656 + $0x10] sm:$0xf]
    %v662 = vld [vmem:[%s656 + $0x14] sm:$0xf]
    %v663 = vld [vmem:[%s656 + $0x18] sm:$0xf]
    %v664 = vld [vmem:[%s656 + $0x1c] sm:$0xf]
    %v665 = vld [vmem:[%s656 + $0x20] sm:$0xf]
    %v666 = vld [vmem:[%s656 + $0x24] sm:$0xf]
    %v667 = vld [vmem:[%s656 + $0x28] sm:$0xf]
    %v668 = vld [vmem:[%s656 + $0x2c] sm:$0xf]
    %v669 = vld [vmem:[%s656 + $0x30] sm:$0xf]
    %v670 = vld [vmem:[%s656 + $0x34] sm:$0xf]
    %v671 = vld [vmem:[%s656 + $0x38] sm:$0xf]
    %v672 = vld [vmem:[%s656 + $0x3c] sm:$0xf]
    %s673 = scalar_lea.vmem %s4, 2
    %v674 = vld [vmem:[%s673] sm:$0x1]
    %v676 = vlaneseq
    %v677 = vshrl.u32 %v676, 7
    %v678 = vsub.s32 0, %v677
    %v679 = vrot.slane %v674, %v678
    %v697 = vunpack.c.l.b16 %v657
    %v698 = vunpack.c.l.b16 %v658
    %v699 = vunpack.c.l.b16 %v659
    %v700 = vunpack.c.l.b16 %v660
    %v701 = vunpack.c.l.b16 %v661
    %v702 = vunpack.c.l.b16 %v662
    %v703 = vunpack.c.l.b16 %v663
    %v704 = vunpack.c.l.b16 %v664
    %v705 = vunpack.c.l.b16 %v665
    %v706 = vunpack.c.l.b16 %v666
    %v707 = vunpack.c.l.b16 %v667
    %v708 = vunpack.c.l.b16 %v668
    %v709 = vunpack.c.l.b16 %v669
    %v710 = vunpack.c.l.b16 %v670
    %v711 = vunpack.c.l.b16 %v671
    %v712 = vunpack.c.l.b16 %v672
    %v713 = vpack.c.b16 %v698, %v697
    %v714 = vpack.c.b16 %v700, %v699
    %v715 = vpack.c.b16 %v702, %v701
    %v716 = vpack.c.b16 %v704, %v703
    %v717 = vpack.c.b16 %v706, %v705
    %v718 = vpack.c.b16 %v708, %v707
    %v719 = vpack.c.b16 %v710, %v709
    %v720 = vpack.c.b16 %v712, %v711
    %729 = vmatprep.subr.bf16.mxu0 0
    %730 = vmatpush1.bf16.msra.mxu0 %v720
    %731 = vmatprep.subr.bf16.mxu0 0
    %732 = vmatpush1.bf16.msra.mxu0 %v719
    %733 = vmatprep.subr.bf16.mxu0 0
    %734 = vmatpush1.bf16.msra.mxu0 %v718
    %735 = vmatprep.subr.bf16.mxu0 0
    %736 = vmatpush1.bf16.msra.mxu0 %v717
    %737 = vmatprep.subr.bf16.mxu0 0
    %738 = vmatpush1.bf16.msra.mxu0 %v716
    %739 = vmatprep.subr.bf16.mxu0 0
    %740 = vmatpush1.bf16.msra.mxu0 %v715
    %741 = vmatprep.subr.bf16.mxu0 0
    %742 = vmatpush1.bf16.msra.mxu0 %v714
    %743 = vmatprep.subr.bf16.mxu0 0
    %744 = vmatpush1.bf16.msra.mxu0 %v713
    %745 = vmatprep.subr.bf16.mxu0 0
    %746 = vmatpush2.bf16.msra.mxu0 0
    %747 = vmatprep.subr.bf16.mxu0 0
    %748 = vmatpush2.bf16.msra.mxu0 0
    %749 = vmatprep.subr.bf16.mxu0 0
    %750 = vmatpush2.bf16.msra.mxu0 0
    %751 = vmatprep.subr.bf16.mxu0 0
    %752 = vmatpush2.bf16.msra.mxu0 0
    %753 = vmatprep.subr.bf16.mxu0 0
    %754 = vmatpush2.bf16.msra.mxu0 0
    %755 = vmatprep.subr.bf16.mxu0 0
    %756 = vmatpush2.bf16.msra.mxu0 0
    %757 = vmatprep.subr.bf16.mxu0 0
    %758 = vmatpush2.bf16.msra.mxu0 0
    %759 = vmatprep.subr.bf16.mxu0 0
    %760 = vmatpush2.bf16.msra.mxu0 0
    %761 = vmatprep.mubr.bf16.mxu0 0
    %762 = vmatmul.mubr.bf16.gmra.mxu0 %v655
    %v763 = vpop.f32.mrf.mxu0
    %v764 = vadd.f32 %v679, %v763
    %v765 = vpop.f32.mrf.mxu0
    %v766 = vpop.f32.mrf.mxu0
    %v767 = vadd.f32 %v679, %v766
    %v768 = vpop.f32.mrf.mxu0
    %769 = vdwg.mxu0
    %v770 = vmax.f32 %v764, 0.0
    %v771 = vmax.f32 %v767, 0.0
    %v772 = vadd.f32 %v536, %v770
    %v773 = vadd.f32 %v537, %v771
    %v774 = vpack.c.bf16 %v773, %v772
    %v775 = vld [vmem:[#allocation6] sm:$0xf]
    %v776 = vld [vmem:[#allocation6 + $0x4] sm:$0xf]
    %v777 = vld [vmem:[#allocation6 + $0x8] sm:$0xf]
    %v778 = vld [vmem:[#allocation6 + $0xc] sm:$0xf]
    %v779 = vld [vmem:[#allocation6 + $0x10] sm:$0xf]
    %v780 = vld [vmem:[#allocation6 + $0x14] sm:$0xf]
    %v781 = vld [vmem:[#allocation6 + $0x18] sm:$0xf]
    %v782 = vld [vmem:[#allocation6 + $0x1c] sm:$0xf]
    %v783 = vld [vmem:[#allocation6 + $0x20] sm:$0xf]
    %v784 = vld [vmem:[#allocation6 + $0x24] sm:$0xf]
    %v785 = vld [vmem:[#allocation6 + $0x28] sm:$0xf]
    %v786 = vld [vmem:[#allocation6 + $0x2c] sm:$0xf]
    %v787 = vld [vmem:[#allocation6 + $0x30] sm:$0xf]
    %v788 = vld [vmem:[#allocation6 + $0x34] sm:$0xf]
    %v789 = vld [vmem:[#allocation6 + $0x38] sm:$0xf]
    %v790 = vld [vmem:[#allocation6 + $0x3c] sm:$0xf]
    %v791 = vld [vmem:[%s6] sm:$0x1]
    %v793 = vlaneseq
    %v794 = vshrl.u32 %v793, 7
    %v795 = vsub.s32 0, %v794
    %v796 = vrot.slane %v791, %v795
    %v814 = vunpack.c.l.b16 %v775
    %v815 = vunpack.c.l.b16 %v776
    %v816 = vunpack.c.l.b16 %v777
    %v817 = vunpack.c.l.b16 %v778
    %v818 = vunpack.c.l.b16 %v779
    %v819 = vunpack.c.l.b16 %v780
    %v820 = vunpack.c.l.b16 %v781
    %v821 = vunpack.c.l.b16 %v782
    %v822 = vunpack.c.l.b16 %v783
    %v823 = vunpack.c.l.b16 %v784
    %v824 = vunpack.c.l.b16 %v785
    %v825 = vunpack.c.l.b16 %v786
    %v826 = vunpack.c.l.b16 %v787
    %v827 = vunpack.c.l.b16 %v788
    %v828 = vunpack.c.l.b16 %v789
    %v829 = vunpack.c.l.b16 %v790
    %v830 = vpack.c.b16 %v815, %v814
    %v831 = vpack.c.b16 %v817, %v816
    %v832 = vpack.c.b16 %v819, %v818
    %v833 = vpack.c.b16 %v821, %v820
    %v834 = vpack.c.b16 %v823, %v822
    %v835 = vpack.c.b16 %v825, %v824
    %v836 = vpack.c.b16 %v827, %v826
    %v837 = vpack.c.b16 %v829, %v828
    %846 = vmatprep.subr.bf16.mxu0 0
    %847 = vmatpush1.bf16.msra.mxu0 %v837
    %848 = vmatprep.subr.bf16.mxu0 0
    %849 = vmatpush1.bf16.msra.mxu0 %v836
    %850 = vmatprep.subr.bf16.mxu0 0
    %851 = vmatpush1.bf16.msra.mxu0 %v835
    %852 = vmatprep.subr.bf16.mxu0 0
    %853 = vmatpush1.bf16.msra.mxu0 %v834
    %854 = vmatprep.subr.bf16.mxu0 0
    %855 = vmatpush1.bf16.msra.mxu0 %v833
    %856 = vmatprep.subr.bf16.mxu0 0
    %857 = vmatpush1.bf16.msra.mxu0 %v832
    %858 = vmatprep.subr.bf16.mxu0 0
    %859 = vmatpush1.bf16.msra.mxu0 %v831
    %860 = vmatprep.subr.bf16.mxu0 0
    %861 = vmatpush1.bf16.msra.mxu0 %v830
    %862 = vmatprep.subr.bf16.mxu0 0
    %863 = vmatpush2.bf16.msra.mxu0 0
    %864 = vmatprep.subr.bf16.mxu0 0
    %865 = vmatpush2.bf16.msra.mxu0 0
    %866 = vmatprep.subr.bf16.mxu0 0
    %867 = vmatpush2.bf16.msra.mxu0 0
    %868 = vmatprep.subr.bf16.mxu0 0
    %869 = vmatpush2.bf16.msra.mxu0 0
    %870 = vmatprep.subr.bf16.mxu0 0
    %871 = vmatpush2.bf16.msra.mxu0 0
    %872 = vmatprep.subr.bf16.mxu0 0
    %873 = vmatpush2.bf16.msra.mxu0 0
    %874 = vmatprep.subr.bf16.mxu0 0
    %875 = vmatpush2.bf16.msra.mxu0 0
    %876 = vmatprep.subr.bf16.mxu0 0
    %877 = vmatpush2.bf16.msra.mxu0 0
    %878 = vmatprep.mubr.bf16.mxu0 0
    %879 = vmatmul.mubr.bf16.gmra.mxu0 %v774
    %v880 = vpop.f32.mrf.mxu0
    %v881 = vadd.f32 %v796, %v880
    %v882 = vpop.f32.mrf.mxu0
    %v883 = vpop.f32.mrf.mxu0
    %v884 = vadd.f32 %v796, %v883
    %v885 = vpop.f32.mrf.mxu0
    %886 = vdwg.mxu0
    %887 = vst [vmem:[%s7] sm:$0xff] %v881
    %888 = vst [vmem:[%s7 + $0x8] sm:$0xff] %v884
    // Predicated region
    $region42: #{_resnet_forward_impl.1} parent=1 // pred_check
      _
    $region43: #{_resnet_forward_impl.1} parent=1 // pred_check_branch
      %890 = sbr.rel (0) target = $region45
    $region44: #{_resnet_forward_impl.1} parent=1 // pred_region
      _
    $region45: #{_resnet_forward_impl.1} parent=1 // pred_fallthru
      _
    // Predicated region
    $region46: #{_resnet_forward_impl.1} parent=1 // pred_check
      _
    $region47: #{_resnet_forward_impl.1} parent=1 // pred_check_branch
      %892 = sbr.rel (0) target = $region49
    $region48: #{_resnet_forward_impl.1} parent=1 // pred_region
      _
    $region49: #{_resnet_forward_impl.1} parent=1 // pred_fallthru
      _
    %893 = vsyncpa [#allocation3], 1
    %894 = vsyncpa [#allocation5], 1

// kernel: _resnet_forward_impl.1
$region0: #{_resnet_forward_impl.1}
  #allocation0 [shape = 'u32[]', space=smem, size = 0x4, offset = 0x4, fixed_abs, tag = 'smem constant byte address 0x4 - core index']
  #allocation1 [shape = 'u32[144,128]{1,0:T(1,128)}', space=vmem, size = 0x12000, scoped, tag = 'internal scratch']
  %s0 = inlined_call_operand.vmem [shape: f32[16,128], index: 0, kind: input, shape index: {}]
  %s1 = inlined_call_operand.hbm [shape: bf16[3,128,128], index: 1, kind: input, shape index: {}]
  %s2 = inlined_call_operand.vmem [shape: f32[3,1,128], index: 2, kind: input, shape index: {}]
  %s3 = inlined_call_operand.hbm [shape: bf16[3,128,128], index: 3, kind: input, shape index: {}]
  %s4 = inlined_call_operand.vmem [shape: f32[3,1,128], index: 4, kind: input, shape index: {}]
  %s5 = inlined_call_operand.hbm [shape: bf16[128,128], index: 5, kind: input, shape index: {}]
  %s6 = inlined_call_operand.vmem [shape: f32[1,128], index: 6, kind: input, shape index: {}]
  %s7 = inlined_call_operand.vmem [shape: f32[16,128], index: 7, kind: output, shape index: {}]
  %s8 = sld [smem:[#allocation0]]
  $region50: #{_resnet_forward_impl.1} parent=0
    _
  %s10 = ssub.s32 1, %s8
  %s11 = scalar_select 0, %s10, %s8
  $region1: #{_resnet_forward_impl.1} parent=0
    #allocation2 [shape = 'u8[98304]{0}', space=vmem, size = 0x18000, scoped, tag = 'input window, operand 1, single buffered']
    #allocation3 [shape = 's32[1]{0}', space=sflag, size = 0x4, scoped, tag = 'scoped memory for _resnet_forward_impl.1']
    #allocation4 [shape = 'u8[98304]{0}', space=vmem, size = 0x18000, scoped, tag = 'input window, operand 3, single buffered']
    #allocation5 [shape = 's32[1]{0}', space=sflag, size = 0x4, scoped, tag = 'scoped memory for _resnet_forward_impl.1']
    #allocation6 [shape = 'u8[32768]{0}', space=vmem, size = 0x8000, scoped, tag = 'input window, operand 5, single buffered']
    %12 = vsyncpa [#allocation3], 0
    %13 = vsyncpa [#allocation5], 0
    // Predicated region
    $region2: #{_resnet_forward_impl.1} parent=1 // pred_check
      _
    $region3: #{_resnet_forward_impl.1} parent=1 // pred_check_branch
      %15 = sbr.rel (0) target = $region5
    $region4: #{_resnet_forward_impl.1} parent=1 // pred_region
      _
    $region5: #{_resnet_forward_impl.1} parent=1 // pred_fallthru
      _
    // Predicated region
    $region6: #{_resnet_forward_impl.1} parent=1 // pred_check
      _
    $region7: #{_resnet_forward_impl.1} parent=1 // pred_check_branch
      %17 = sbr.rel (0) target = $region9
    $region8: #{_resnet_forward_impl.1} parent=1 // pred_region
      %s19 = ssub.s32 3072, 3072
      %20 = vsyncadd [#allocation3], %s19
      %s21 = sshll.u32 [#allocation2], 4
      %s22 = int_to_ptr.vmem [resolvable:$true] %s21
      %27 = dma.hbm_to_vmem [thread:$0]  %s1, 3072, %s22, [#allocation3], 64, 64, 4
    $region9: #{_resnet_forward_impl.1} parent=1 // pred_fallthru
      _
    // Predicated region
    $region10: #{_resnet_forward_impl.1} parent=1 // pred_check
      _
    $region11: #{_resnet_forward_impl.1} parent=1 // pred_check_branch
      %29 = sbr.rel (0) target = $region13
    $region12: #{_resnet_forward_impl.1} parent=1 // pred_region
      _
    $region13: #{_resnet_forward_impl.1} parent=1 // pred_fallthru
      _
    // Predicated region
    $region14: #{_resnet_forward_impl.1} parent=1 // pred_check
      _
    $region15: #{_resnet_forward_impl.1} parent=1 // pred_check_branch
      %31 = sbr.rel (0) target = $region17
    $region16: #{_resnet_forward_impl.1} parent=1 // pred_region
      %s33 = ssub.s32 3072, 3072
      %34 = vsyncadd [#allocation5], %s33
      %s35 = sshll.u32 [#allocation4], 4
      %s36 = int_to_ptr.vmem [resolvable:$true] %s35
      %41 = dma.hbm_to_vmem [thread:$0]  %s3, 3072, %s36, [#allocation5], 64, 64, 4
    $region17: #{_resnet_forward_impl.1} parent=1 // pred_fallthru
      _
    // Predicated region
    $region18: #{_resnet_forward_impl.1} parent=1 // pred_check
      _
    $region19: #{_resnet_forward_impl.1} parent=1 // pred_check_branch
      %43 = sbr.rel (0) target = $region21
    $region20: #{_resnet_forward_impl.1} parent=1 // pred_region
      _
    $region21: #{_resnet_forward_impl.1} parent=1 // pred_fallthru
      _
    // Predicated region
    $region22: #{_resnet_forward_impl.1} parent=1 // pred_check
      _
    $region23: #{_resnet_forward_impl.1} parent=1 // pred_check_branch
      %45 = sbr.rel (0) target = $region25
    $region24: #{_resnet_forward_impl.1} parent=1 // pred_region
      %s47 = ssub.s32 1024, 1024
      %48 = vsyncadd [#allocation5], %s47
      %s49 = sshll.u32 [#allocation6], 4
      %s50 = int_to_ptr.vmem [resolvable:$true] %s49
      %55 = dma.hbm_to_vmem [thread:$0]  %s5, 1024, %s50, [#allocation5], 64, 64, 4
    $region25: #{_resnet_forward_impl.1} parent=1 // pred_fallthru
      _
    // Predicated region
    $region26: #{_resnet_forward_impl.1} parent=1 // pred_check
      _
    $region27: #{_resnet_forward_impl.1} parent=1 // pred_check_branch
      %57 = sbr.rel (0) target = $region29
    $region28: #{_resnet_forward_impl.1} parent=1 // pred_region
      _
    $region29: #{_resnet_forward_impl.1} parent=1 // pred_fallthru
      _
    // Predicated region
    $region30: #{_resnet_forward_impl.1} parent=1 // pred_check
      _
    $region31: #{_resnet_forward_impl.1} parent=1 // pred_check_branch
      %59 = sbr.rel (0) target = $region33
    $region32: #{_resnet_forward_impl.1} parent=1 // pred_region
      %60 = dma.done [#allocation3], 3072
    $region33: #{_resnet_forward_impl.1} parent=1 // pred_fallthru
      _
    // Predicated region
    $region34: #{_resnet_forward_impl.1} parent=1 // pred_check
      _
    $region35: #{_resnet_forward_impl.1} parent=1 // pred_check_branch
      %62 = sbr.rel (0) target = $region37
    $region36: #{_resnet_forward_impl.1} parent=1 // pred_region
      %63 = dma.done [#allocation5], 3072
    $region37: #{_resnet_forward_impl.1} parent=1 // pred_fallthru
      _
    // Predicated region
    $region38: #{_resnet_forward_impl.1} parent=1 // pred_check
      _
    $region39: #{_resnet_forward_impl.1} parent=1 // pred_check_branch
      %65 = sbr.rel (0) target = $region41
    $region40: #{_resnet_forward_impl.1} parent=1 // pred_region
      %66 = dma.done [#allocation5], 1024
    $region41: #{_resnet_forward_impl.1} parent=1 // pred_fallthru
      _
    %v68 = vld [vmem:[%s0] sm:$0xff]
    %v69 = vld [vmem:[%s0 + $0x8] sm:$0xff]
    %v70 = vpack.c.bf16 %v69, %v68
    %v71 = vld [vmem:[#allocation2] sm:$0xf]
    %v72 = vld [vmem:[#allocation2 + $0x4] sm:$0xf]
    %v73 = vld [vmem:[#allocation2 + $0x8] sm:$0xf]
    %v74 = vld [vmem:[#allocation2 + $0xc] sm:$0xf]
    %v75 = vld [vmem:[#allocation2 + $0x10] sm:$0xf]
    %v76 = vld [vmem:[#allocation2 + $0x14] sm:$0xf]
    %v77 = vld [vmem:[#allocation2 + $0x18] sm:$0xf]
    %v78 = vld [vmem:[#allocation2 + $0x1c] sm:$0xf]
    %v79 = vld [vmem:[#allocation2 + $0x20] sm:$0xf]
    %v80 = vld [vmem:[#allocation2 + $0x24] sm:$0xf]
    %v81 = vld [vmem:[#allocation2 + $0x28] sm:$0xf]
    %v82 = vld [vmem:[#allocation2 + $0x2c] sm:$0xf]
    %v83 = vld [vmem:[#allocation2 + $0x30] sm:$0xf]
    %v84 = vld [vmem:[#allocation2 + $0x34] sm:$0xf]
    %v85 = vld [vmem:[#allocation2 + $0x38] sm:$0xf]
    %v86 = vld [vmem:[#allocation2 + $0x3c] sm:$0xf]
    %v87 = vld [vmem:[%s2] sm:$0x1]
    %v89 = vlaneseq
    %v90 = vshrl.u32 %v89, 7
    %v91 = vsub.s32 0, %v90
    %v92 = vrot.slane %v87, %v91
    %v110 = vunpack.c.l.b16 %v71
    %v111 = vunpack.c.l.b16 %v72
    %v112 = vunpack.c.l.b16 %v73
    %v113 = vunpack.c.l.b16 %v74
    %v114 = vunpack.c.l.b16 %v75
    %v115 = vunpack.c.l.b16 %v76
    %v116 = vunpack.c.l.b16 %v77
    %v117 = vunpack.c.l.b16 %v78
    %v118 = vunpack.c.l.b16 %v79
    %v119 = vunpack.c.l.b16 %v80
    %v120 = vunpack.c.l.b16 %v81
    %v121 = vunpack.c.l.b16 %v82
    %v122 = vunpack.c.l.b16 %v83
    %v123 = vunpack.c.l.b16 %v84
    %v124 = vunpack.c.l.b16 %v85
    %v125 = vunpack.c.l.b16 %v86
    %v126 = vpack.c.b16 %v111, %v110
    %v127 = vpack.c.b16 %v113, %v112
    %v128 = vpack.c.b16 %v115, %v114
    %v129 = vpack.c.b16 %v117, %v116
    %v130 = vpack.c.b16 %v119, %v118
    %v131 = vpack.c.b16 %v121, %v120
    %v132 = vpack.c.b16 %v123, %v122
    %v133 = vpack.c.b16 %v125, %v124
    %142 = vmatprep.subr.bf16.mxu0 0
    %143 = vmatpush1.bf16.msra.mxu0 %v133
    %144 = vmatprep.subr.bf16.mxu0 0
    %145 = vmatpush1.bf16.msra.mxu0 %v132
    %146 = vmatprep.subr.bf16.mxu0 0
    %147 = vmatpush1.bf16.msra.mxu0 %v131
    %148 = vmatprep.subr.bf16.mxu0 0
    %149 = vmatpush1.bf16.msra.mxu0 %v130
    %150 = vmatprep.subr.bf16.mxu0 0
    %151 = vmatpush1.bf16.msra.mxu0 %v129
    %152 = vmatprep.subr.bf16.mxu0 0
    %153 = vmatpush1.bf16.msra.mxu0 %v128
    %154 = vmatprep.subr.bf16.mxu0 0
    %155 = vmatpush1.bf16.msra.mxu0 %v127
    %156 = vmatprep.subr.bf16.mxu0 0
    %157 = vmatpush1.bf16.msra.mxu0 %v126
    %158 = vmatprep.subr.bf16.mxu0 0
    %159 = vmatpush2.bf16.msra.mxu0 0
    %160 = vmatprep.subr.bf16.mxu0 0
    %161 = vmatpush2.bf16.msra.mxu0 0
    %162 = vmatprep.subr.bf16.mxu0 0
    %163 = vmatpush2.bf16.msra.mxu0 0
    %164 = vmatprep.subr.bf16.mxu0 0
    %165 = vmatpush2.bf16.msra.mxu0 0
    %166 = vmatprep.subr.bf16.mxu0 0
    %167 = vmatpush2.bf16.msra.mxu0 0
    %168 = vmatprep.subr.bf16.mxu0 0
    %169 = vmatpush2.bf16.msra.mxu0 0
    %170 = vmatprep.subr.bf16.mxu0 0
    %171 = vmatpush2.bf16.msra.mxu0 0
    %172 = vmatprep.subr.bf16.mxu0 0
    %173 = vmatpush2.bf16.msra.mxu0 0
    %174 = vmatprep.mubr.bf16.mxu0 0
    %175 = vmatmul.mubr.bf16.gmra.mxu0 %v70
    %v176 = vpop.f32.mrf.mxu0
    %v177 = vadd.f32 %v92, %v176
    %v178 = vpop.f32.mrf.mxu0
    %v179 = vpop.f32.mrf.mxu0
    %v180 = vadd.f32 %v92, %v179
    %v181 = vpop.f32.mrf.mxu0
    %182 = vdwg.mxu0
    %v183 = vmax.f32 %v177, 0.0
    %v184 = vmax.f32 %v180, 0.0
    %v185 = vpack.c.bf16 %v184, %v183
    %v186 = vld [vmem:[#allocation4] sm:$0xf]
    %v187 = vld [vmem:[#allocation4 + $0x4] sm:$0xf]
    %v188 = vld [vmem:[#allocation4 + $0x8] sm:$0xf]
    %v189 = vld [vmem:[#allocation4 + $0xc] sm:$0xf]
    %v190 = vld [vmem:[#allocation4 + $0x10] sm:$0xf]
    %v191 = vld [vmem:[#allocation4 + $0x14] sm:$0xf]
    %v192 = vld [vmem:[#allocation4 + $0x18] sm:$0xf]
    %v193 = vld [vmem:[#allocation4 + $0x1c] sm:$0xf]
    %v194 = vld [vmem:[#allocation4 + $0x20] sm:$0xf]
    %v195 = vld [vmem:[#allocation4 + $0x24] sm:$0xf]
    %v196 = vld [vmem:[#allocation4 + $0x28] sm:$0xf]
    %v197 = vld [vmem:[#allocation4 + $0x2c] sm:$0xf]
    %v198 = vld [vmem:[#allocation4 + $0x30] sm:$0xf]
    %v199 = vld [vmem:[#allocation4 + $0x34] sm:$0xf]
    %v200 = vld [vmem:[#allocation4 + $0x38] sm:$0xf]
    %v201 = vld [vmem:[#allocation4 + $0x3c] sm:$0xf]
    %v202 = vld [vmem:[%s4] sm:$0x1]
    %v204 = vlaneseq
    %v205 = vshrl.u32 %v204, 7
    %v206 = vsub.s32 0, %v205
    %v207 = vrot.slane %v202, %v206
    %v225 = vunpack.c.l.b16 %v186
    %v226 = vunpack.c.l.b16 %v187
    %v227 = vunpack.c.l.b16 %v188
    %v228 = vunpack.c.l.b16 %v189
    %v229 = vunpack.c.l.b16 %v190
    %v230 = vunpack.c.l.b16 %v191
    %v231 = vunpack.c.l.b16 %v192
    %v232 = vunpack.c.l.b16 %v193
    %v233 = vunpack.c.l.b16 %v194
    %v234 = vunpack.c.l.b16 %v195
    %v235 = vunpack.c.l.b16 %v196
    %v236 = vunpack.c.l.b16 %v197
    %v237 = vunpack.c.l.b16 %v198
    %v238 = vunpack.c.l.b16 %v199
    %v239 = vunpack.c.l.b16 %v200
    %v240 = vunpack.c.l.b16 %v201
    %v241 = vpack.c.b16 %v226, %v225
    %v242 = vpack.c.b16 %v228, %v227
    %v243 = vpack.c.b16 %v230, %v229
    %v244 = vpack.c.b16 %v232, %v231
    %v245 = vpack.c.b16 %v234, %v233
    %v246 = vpack.c.b16 %v236, %v235
    %v247 = vpack.c.b16 %v238, %v237
    %v248 = vpack.c.b16 %v240, %v239
    %257 = vmatprep.subr.bf16.mxu0 0
    %258 = vmatpush1.bf16.msra.mxu0 %v248
    %259 = vmatprep.subr.bf16.mxu0 0
    %260 = vmatpush1.bf16.msra.mxu0 %v247
    %261 = vmatprep.subr.bf16.mxu0 0
    %262 = vmatpush1.bf16.msra.mxu0 %v246
    %263 = vmatprep.subr.bf16.mxu0 0
    %264 = vmatpush1.bf16.msra.mxu0 %v245
    %265 = vmatprep.subr.bf16.mxu0 0
    %266 = vmatpush1.bf16.msra.mxu0 %v244
    %267 = vmatprep.subr.bf16.mxu0 0
    %268 = vmatpush1.bf16.msra.mxu0 %v243
    %269 = vmatprep.subr.bf16.mxu0 0
    %270 = vmatpush1.bf16.msra.mxu0 %v242
    %271 = vmatprep.subr.bf16.mxu0 0
    %272 = vmatpush1.bf16.msra.mxu0 %v241
    %273 = vmatprep.subr.bf16.mxu0 0
    %274 = vmatpush2.bf16.msra.mxu0 0
    %275 = vmatprep.subr.bf16.mxu0 0
    %276 = vmatpush2.bf16.msra.mxu0 0
    %277 = vmatprep.subr.bf16.mxu0 0
    %278 = vmatpush2.bf16.msra.mxu0 0
    %279 = vmatprep.subr.bf16.mxu0 0
    %280 = vmatpush2.bf16.msra.mxu0 0
    %281 = vmatprep.subr.bf16.mxu0 0
    %282 = vmatpush2.bf16.msra.mxu0 0
    %283 = vmatprep.subr.bf16.mxu0 0
    %284 = vmatpush2.bf16.msra.mxu0 0
    %285 = vmatprep.subr.bf16.mxu0 0
    %286 = vmatpush2.bf16.msra.mxu0 0
    %287 = vmatprep.subr.bf16.mxu0 0
    %288 = vmatpush2.bf16.msra.mxu0 0
    %289 = vmatprep.mubr.bf16.mxu0 0
    %290 = vmatmul.mubr.bf16.gmra.mxu0 %v185
    %v291 = vpop.f32.mrf.mxu0
    %v292 = vadd.f32 %v207, %v291
    %v293 = vpop.f32.mrf.mxu0
    %v294 = vpop.f32.mrf.mxu0
    %v295 = vadd.f32 %v207, %v294
    %v296 = vpop.f32.mrf.mxu0
    %297 = vdwg.mxu0
    %v298 = vmax.f32 %v292, 0.0
    %v299 = vmax.f32 %v295, 0.0
    %v300 = vadd.f32 %v68, %v298
    %v301 = vadd.f32 %v69, %v299
    %v302 = vpack.c.bf16 %v301, %v300
    %s303 = scalar_lea.vmem [#allocation2], 64
    %v304 = vld [vmem:[%s303] sm:$0xf]
    %v305 = vld [vmem:[%s303 + $0x4] sm:$0xf]
    %v306 = vld [vmem:[%s303 + $0x8] sm:$0xf]
    %v307 = vld [vmem:[%s303 + $0xc] sm:$0xf]
    %v308 = vld [vmem:[%s303 + $0x10] sm:$0xf]
    %v309 = vld [vmem:[%s303 + $0x14] sm:$0xf]
    %v310 = vld [vmem:[%s303 + $0x18] sm:$0xf]
    %v311 = vld [vmem:[%s303 + $0x1c] sm:$0xf]
    %v312 = vld [vmem:[%s303 + $0x20] sm:$0xf]
    %v313 = vld [vmem:[%s303 + $0x24] sm:$0xf]
    %v314 = vld [vmem:[%s303 + $0x28] sm:$0xf]
    %v315 = vld [vmem:[%s303 + $0x2c] sm:$0xf]
    %v316 = vld [vmem:[%s303 + $0x30] sm:$0xf]
    %v317 = vld [vmem:[%s303 + $0x34] sm:$0xf]
    %v318 = vld [vmem:[%s303 + $0x38] sm:$0xf]
    %v319 = vld [vmem:[%s303 + $0x3c] sm:$0xf]
    %s320 = scalar_lea.vmem %s2, 1
    %v321 = vld [vmem:[%s320] sm:$0x1]
    %v323 = vlaneseq
    %v324 = vshrl.u32 %v323, 7
    %v325 = vsub.s32 0, %v324
    %v326 = vrot.slane %v321, %v325
    %v344 = vunpack.c.l.b16 %v304
    %v345 = vunpack.c.l.b16 %v305
    %v346 = vunpack.c.l.b16 %v306
    %v347 = vunpack.c.l.b16 %v307
    %v348 = vunpack.c.l.b16 %v308
    %v349 = vunpack.c.l.b16 %v309
    %v350 = vunpack.c.l.b16 %v310
    %v351 = vunpack.c.l.b16 %v311
    %v352 = vunpack.c.l.b16 %v312
    %v353 = vunpack.c.l.b16 %v313
    %v354 = vunpack.c.l.b16 %v314
    %v355 = vunpack.c.l.b16 %v315
    %v356 = vunpack.c.l.b16 %v316
    %v357 = vunpack.c.l.b16 %v317
    %v358 = vunpack.c.l.b16 %v318
    %v359 = vunpack.c.l.b16 %v319
    %v360 = vpack.c.b16 %v345, %v344
    %v361 = vpack.c.b16 %v347, %v346
    %v362 = vpack.c.b16 %v349, %v348
    %v363 = vpack.c.b16 %v351, %v350
    %v364 = vpack.c.b16 %v353, %v352
    %v365 = vpack.c.b16 %v355, %v354
    %v366 = vpack.c.b16 %v357, %v356
    %v367 = vpack.c.b16 %v359, %v358
    %376 = vmatprep.subr.bf16.mxu0 0
    %377 = vmatpush1.bf16.msra.mxu0 %v367
    %378 = vmatprep.subr.bf16.mxu0 0
    %379 = vmatpush1.bf16.msra.mxu0 %v366
    %380 = vmatprep.subr.bf16.mxu0 0
    %381 = vmatpush1.bf16.msra.mxu0 %v365
    %382 = vmatprep.subr.bf16.mxu0 0
    %383 = vmatpush1.bf16.msra.mxu0 %v364
    %384 = vmatprep.subr.bf16.mxu0 0
    %385 = vmatpush1.bf16.msra.mxu0 %v363
    %386 = vmatprep.subr.bf16.mxu0 0
    %387 = vmatpush1.bf16.msra.mxu0 %v362
    %388 = vmatprep.subr.bf16.mxu0 0
    %389 = vmatpush1.bf16.msra.mxu0 %v361
    %390 = vmatprep.subr.bf16.mxu0 0
    %391 = vmatpush1.bf16.msra.mxu0 %v360
    %392 = vmatprep.subr.bf16.mxu0 0
    %393 = vmatpush2.bf16.msra.mxu0 0
    %394 = vmatprep.subr.bf16.mxu0 0
    %395 = vmatpush2.bf16.msra.mxu0 0
    %396 = vmatprep.subr.bf16.mxu0 0
    %397 = vmatpush2.bf16.msra.mxu0 0
    %398 = vmatprep.subr.bf16.mxu0 0
    %399 = vmatpush2.bf16.msra.mxu0 0
    %400 = vmatprep.subr.bf16.mxu0 0
    %401 = vmatpush2.bf16.msra.mxu0 0
    %402 = vmatprep.subr.bf16.mxu0 0
    %403 = vmatpush2.bf16.msra.mxu0 0
    %404 = vmatprep.subr.bf16.mxu0 0
    %405 = vmatpush2.bf16.msra.mxu0 0
    %406 = vmatprep.subr.bf16.mxu0 0
    %407 = vmatpush2.bf16.msra.mxu0 0
    %408 = vmatprep.mubr.bf16.mxu0 0
    %409 = vmatmul.mubr.bf16.gmra.mxu0 %v302
    %v410 = vpop.f32.mrf.mxu0
    %v411 = vadd.f32 %v326, %v410
    %v412 = vpop.f32.mrf.mxu0
    %v413 = vpop.f32.mrf.mxu0
    %v414 = vadd.f32 %v326, %v413
    %v415 = vpop.f32.mrf.mxu0
    %416 = vdwg.mxu0
    %v417 = vmax.f32 %v411, 0.0
    %v418 = vmax.f32 %v414, 0.0
    %v419 = vpack.c.bf16 %v418, %v417
    %s420 = scalar_lea.vmem [#allocation4], 64
    %v421 = vld [vmem:[%s420] sm:$0xf]
    %v422 = vld [vmem:[%s420 + $0x4] sm:$0xf]
    %v423 = vld [vmem:[%s420 + $0x8] sm:$0xf]
    %v424 = vld [vmem:[%s420 + $0xc] sm:$0xf]
    %v425 = vld [vmem:[%s420 + $0x10] sm:$0xf]
    %v426 = vld [vmem:[%s420 + $0x14] sm:$0xf]
    %v427 = vld [vmem:[%s420 + $0x18] sm:$0xf]
    %v428 = vld [vmem:[%s420 + $0x1c] sm:$0xf]
    %v429 = vld [vmem:[%s420 + $0x20] sm:$0xf]
    %v430 = vld [vmem:[%s420 + $0x24] sm:$0xf]
    %v431 = vld [vmem:[%s420 + $0x28] sm:$0xf]
    %v432 = vld [vmem:[%s420 + $0x2c] sm:$0xf]
    %v433 = vld [vmem:[%s420 + $0x30] sm:$0xf]
    %v434 = vld [vmem:[%s420 + $0x34] sm:$0xf]
    %v435 = vld [vmem:[%s420 + $0x38] sm:$0xf]
    %v436 = vld [vmem:[%s420 + $0x3c] sm:$0xf]
    %s437 = scalar_lea.vmem %s4, 1
    %v438 = vld [vmem:[%s437] sm:$0x1]
    %v440 = vlaneseq
    %v441 = vshrl.u32 %v440, 7
    %v442 = vsub.s32 0, %v441
    %v443 = vrot.slane %v438, %v442
    %v461 = vunpack.c.l.b16 %v421
    %v462 = vunpack.c.l.b16 %v422
    %v463 = vunpack.c.l.b16 %v423
    %v464 = vunpack.c.l.b16 %v424
    %v465 = vunpack.c.l.b16 %v425
    %v466 = vunpack.c.l.b16 %v426
    %v467 = vunpack.c.l.b16 %v427
    %v468 = vunpack.c.l.b16 %v428
    %v469 = vunpack.c.l.b16 %v429
    %v470 = vunpack.c.l.b16 %v430
    %v471 = vunpack.c.l.b16 %v431
    %v472 = vunpack.c.l.b16 %v432
    %v473 = vunpack.c.l.b16 %v433
    %v474 = vunpack.c.l.b16 %v434
    %v475 = vunpack.c.l.b16 %v435
    %v476 = vunpack.c.l.b16 %v436
    %v477 = vpack.c.b16 %v462, %v461
    %v478 = vpack.c.b16 %v464, %v463
    %v479 = vpack.c.b16 %v466, %v465
    %v480 = vpack.c.b16 %v468, %v467
    %v481 = vpack.c.b16 %v470, %v469
    %v482 = vpack.c.b16 %v472, %v471
    %v483 = vpack.c.b16 %v474, %v473
    %v484 = vpack.c.b16 %v476, %v475
    %493 = vmatprep.subr.bf16.mxu0 0
    %494 = vmatpush1.bf16.msra.mxu0 %v484
    %495 = vmatprep.subr.bf16.mxu0 0
    %496 = vmatpush1.bf16.msra.mxu0 %v483
    %497 = vmatprep.subr.bf16.mxu0 0
    %498 = vmatpush1.bf16.msra.mxu0 %v482
    %499 = vmatprep.subr.bf16.mxu0 0
    %500 = vmatpush1.bf16.msra.mxu0 %v481
    %501 = vmatprep.subr.bf16.mxu0 0
    %502 = vmatpush1.bf16.msra.mxu0 %v480
    %503 = vmatprep.subr.bf16.mxu0 0
    %504 = vmatpush1.bf16.msra.mxu0 %v479
    %505 = vmatprep.subr.bf16.mxu0 0
    %506 = vmatpush1.bf16.msra.mxu0 %v478
    %507 = vmatprep.subr.bf16.mxu0 0
    %508 = vmatpush1.bf16.msra.mxu0 %v477
    %509 = vmatprep.subr.bf16.mxu0 0
    %510 = vmatpush2.bf16.msra.mxu0 0
    %511 = vmatprep.subr.bf16.mxu0 0
    %512 = vmatpush2.bf16.msra.mxu0 0
    %513 = vmatprep.subr.bf16.mxu0 0
    %514 = vmatpush2.bf16.msra.mxu0 0
    %515 = vmatprep.subr.bf16.mxu0 0
    %516 = vmatpush2.bf16.msra.mxu0 0
    %517 = vmatprep.subr.bf16.mxu0 0
    %518 = vmatpush2.bf16.msra.mxu0 0
    %519 = vmatprep.subr.bf16.mxu0 0
    %520 = vmatpush2.bf16.msra.mxu0 0
    %521 = vmatprep.subr.bf16.mxu0 0
    %522 = vmatpush2.bf16.msra.mxu0 0
    %523 = vmatprep.subr.bf16.mxu0 0
    %524 = vmatpush2.bf16.msra.mxu0 0
    %525 = vmatprep.mubr.bf16.mxu0 0
    %526 = vmatmul.mubr.bf16.gmra.mxu0 %v419
    %v527 = vpop.f32.mrf.mxu0
    %v528 = vadd.f32 %v443, %v527
    %v529 = vpop.f32.mrf.mxu0
    %v530 = vpop.f32.mrf.mxu0
    %v531 = vadd.f32 %v443, %v530
    %v532 = vpop.f32.mrf.mxu0
    %533 = vdwg.mxu0
    %v534 = vmax.f32 %v528, 0.0
    %v535 = vmax.f32 %v531, 0.0
    %v536 = vadd.f32 %v300, %v534
    %v537 = vadd.f32 %v301, %v535
    %v538 = vpack.c.bf16 %v537, %v536
    %s539 = scalar_lea.vmem [#allocation2], 128
    %v540 = vld [vmem:[%s539] sm:$0xf]
    %v541 = vld [vmem:[%s539 + $0x4] sm:$0xf]
    %v542 = vld [vmem:[%s539 + $0x8] sm:$0xf]
    %v543 = vld [vmem:[%s539 + $0xc] sm:$0xf]
    %v544 = vld [vmem:[%s539 + $0x10] sm:$0xf]
    %v545 = vld [vmem:[%s539 + $0x14] sm:$0xf]
    %v546 = vld [vmem:[%s539 + $0x18] sm:$0xf]
    %v547 = vld [vmem:[%s539 + $0x1c] sm:$0xf]
    %v548 = vld [vmem:[%s539 + $0x20] sm:$0xf]
    %v549 = vld [vmem:[%s539 + $0x24] sm:$0xf]
    %v550 = vld [vmem:[%s539 + $0x28] sm:$0xf]
    %v551 = vld [vmem:[%s539 + $0x2c] sm:$0xf]
    %v552 = vld [vmem:[%s539 + $0x30] sm:$0xf]
    %v553 = vld [vmem:[%s539 + $0x34] sm:$0xf]
    %v554 = vld [vmem:[%s539 + $0x38] sm:$0xf]
    %v555 = vld [vmem:[%s539 + $0x3c] sm:$0xf]
    %s556 = scalar_lea.vmem %s2, 2
    %v557 = vld [vmem:[%s556] sm:$0x1]
    %v559 = vlaneseq
    %v560 = vshrl.u32 %v559, 7
    %v561 = vsub.s32 0, %v560
    %v562 = vrot.slane %v557, %v561
    %v580 = vunpack.c.l.b16 %v540
    %v581 = vunpack.c.l.b16 %v541
    %v582 = vunpack.c.l.b16 %v542
    %v583 = vunpack.c.l.b16 %v543
    %v584 = vunpack.c.l.b16 %v544
    %v585 = vunpack.c.l.b16 %v545
    %v586 = vunpack.c.l.b16 %v546
    %v587 = vunpack.c.l.b16 %v547
    %v588 = vunpack.c.l.b16 %v548
    %v589 = vunpack.c.l.b16 %v549
    %v590 = vunpack.c.l.b16 %v550
    %v591 = vunpack.c.l.b16 %v551
    %v592 = vunpack.c.l.b16 %v552
    %v593 = vunpack.c.l.b16 %v553
    %v594 = vunpack.c.l.b16 %v554
    %v595 = vunpack.c.l.b16 %v555
    %v596 = vpack.c.b16 %v581, %v580
    %v597 = vpack.c.b16 %v583, %v582
    %v598 = vpack.c.b16 %v585, %v584
    %v599 = vpack.c.b16 %v587, %v586
    %v600 = vpack.c.b16 %v589, %v588
    %v601 = vpack.c.b16 %v591, %v590
    %v602 = vpack.c.b16 %v593, %v592
    %v603 = vpack.c.b16 %v595, %v594
    %612 = vmatprep.subr.bf16.mxu0 0
    %613 = vmatpush1.bf16.msra.mxu0 %v603
    %614 = vmatprep.subr.bf16.mxu0 0
    %615 = vmatpush1.bf16.msra.mxu0 %v602
    %616 = vmatprep.subr.bf16.mxu0 0
    %617 = vmatpush1.bf16.msra.mxu0 %v601
    %618 = vmatprep.subr.bf16.mxu0 0
    %619 = vmatpush1.bf16.msra.mxu0 %v600
    %620 = vmatprep.subr.bf16.mxu0 0
    %621 = vmatpush1.bf16.msra.mxu0 %v599
    %622 = vmatprep.subr.bf16.mxu0 0
    %623 = vmatpush1.bf16.msra.mxu0 %v598
    %624 = vmatprep.subr.bf16.mxu0 0
    %625 = vmatpush1.bf16.msra.mxu0 %v597
    %626 = vmatprep.subr.bf16.mxu0 0
    %627 = vmatpush1.bf16.msra.mxu0 %v596
    %628 = vmatprep.subr.bf16.mxu0 0
    %629 = vmatpush2.bf16.msra.mxu0 0
    %630 = vmatprep.subr.bf16.mxu0 0
    %631 = vmatpush2.bf16.msra.mxu0 0
    %632 = vmatprep.subr.bf16.mxu0 0
    %633 = vmatpush2.bf16.msra.mxu0 0
    %634 = vmatprep.subr.bf16.mxu0 0
    %635 = vmatpush2.bf16.msra.mxu0 0
    %636 = vmatprep.subr.bf16.mxu0 0
    %637 = vmatpush2.bf16.msra.mxu0 0
    %638 = vmatprep.subr.bf16.mxu0 0
    %639 = vmatpush2.bf16.msra.mxu0 0
    %640 = vmatprep.subr.bf16.mxu0 0
    %641 = vmatpush2.bf16.msra.mxu0 0
    %642 = vmatprep.subr.bf16.mxu0 0
    %643 = vmatpush2.bf16.msra.mxu0 0
    %644 = vmatprep.mubr.bf16.mxu0 0
    %645 = vmatmul.mubr.bf16.gmra.mxu0 %v538
    %v646 = vpop.f32.mrf.mxu0
    %v647 = vadd.f32 %v562, %v646
    %v648 = vpop.f32.mrf.mxu0
    %v649 = vpop.f32.mrf.mxu0
    %v650 = vadd.f32 %v562, %v649
    %v651 = vpop.f32.mrf.mxu0
    %652 = vdwg.mxu0
    %v653 = vmax.f32 %v647, 0.0
    %v654 = vmax.f32 %v650, 0.0
    %v655 = vpack.c.bf16 %v654, %v653
    %s656 = scalar_lea.vmem [#allocation4], 128
    %v657 = vld [vmem:[%s656] sm:$0xf]
    %v658 = vld [vmem:[%s656 + $0x4] sm:$0xf]
    %v659 = vld [vmem:[%s656 + $0x8] sm:$0xf]
    %v660 = vld [vmem:[%s656 + $0xc] sm:$0xf]
    %v661 = vld [vmem:[%s656 + $0x10] sm:$0xf]
    %v662 = vld [vmem:[%s656 + $0x14] sm:$0xf]
    %v663 = vld [vmem:[%s656 + $0x18] sm:$0xf]
    %v664 = vld [vmem:[%s656 + $0x1c] sm:$0xf]
    %v665 = vld [vmem:[%s656 + $0x20] sm:$0xf]
    %v666 = vld [vmem:[%s656 + $0x24] sm:$0xf]
    %v667 = vld [vmem:[%s656 + $0x28] sm:$0xf]
    %v668 = vld [vmem:[%s656 + $0x2c] sm:$0xf]
    %v669 = vld [vmem:[%s656 + $0x30] sm:$0xf]
    %v670 = vld [vmem:[%s656 + $0x34] sm:$0xf]
    %v671 = vld [vmem:[%s656 + $0x38] sm:$0xf]
    %v672 = vld [vmem:[%s656 + $0x3c] sm:$0xf]
    %s673 = scalar_lea.vmem %s4, 2
    %v674 = vld [vmem:[%s673] sm:$0x1]
    %v676 = vlaneseq
    %v677 = vshrl.u32 %v676, 7
    %v678 = vsub.s32 0, %v677
    %v679 = vrot.slane %v674, %v678
    %v697 = vunpack.c.l.b16 %v657
    %v698 = vunpack.c.l.b16 %v658
    %v699 = vunpack.c.l.b16 %v659
    %v700 = vunpack.c.l.b16 %v660
    %v701 = vunpack.c.l.b16 %v661
    %v702 = vunpack.c.l.b16 %v662
    %v703 = vunpack.c.l.b16 %v663
    %v704 = vunpack.c.l.b16 %v664
    %v705 = vunpack.c.l.b16 %v665
    %v706 = vunpack.c.l.b16 %v666
    %v707 = vunpack.c.l.b16 %v667
    %v708 = vunpack.c.l.b16 %v668
    %v709 = vunpack.c.l.b16 %v669
    %v710 = vunpack.c.l.b16 %v670
    %v711 = vunpack.c.l.b16 %v671
    %v712 = vunpack.c.l.b16 %v672
    %v713 = vpack.c.b16 %v698, %v697
    %v714 = vpack.c.b16 %v700, %v699
    %v715 = vpack.c.b16 %v702, %v701
    %v716 = vpack.c.b16 %v704, %v703
    %v717 = vpack.c.b16 %v706, %v705
    %v718 = vpack.c.b16 %v708, %v707
    %v719 = vpack.c.b16 %v710, %v709
    %v720 = vpack.c.b16 %v712, %v711
    %729 = vmatprep.subr.bf16.mxu0 0
    %730 = vmatpush1.bf16.msra.mxu0 %v720
    %731 = vmatprep.subr.bf16.mxu0 0
    %732 = vmatpush1.bf16.msra.mxu0 %v719
    %733 = vmatprep.subr.bf16.mxu0 0
    %734 = vmatpush1.bf16.msra.mxu0 %v718
    %735 = vmatprep.subr.bf16.mxu0 0
    %736 = vmatpush1.bf16.msra.mxu0 %v717
    %737 = vmatprep.subr.bf16.mxu0 0
    %738 = vmatpush1.bf16.msra.mxu0 %v716
    %739 = vmatprep.subr.bf16.mxu0 0
    %740 = vmatpush1.bf16.msra.mxu0 %v715
    %741 = vmatprep.subr.bf16.mxu0 0
    %742 = vmatpush1.bf16.msra.mxu0 %v714
    %743 = vmatprep.subr.bf16.mxu0 0
    %744 = vmatpush1.bf16.msra.mxu0 %v713
    %745 = vmatprep.subr.bf16.mxu0 0
    %746 = vmatpush2.bf16.msra.mxu0 0
    %747 = vmatprep.subr.bf16.mxu0 0
    %748 = vmatpush2.bf16.msra.mxu0 0
    %749 = vmatprep.subr.bf16.mxu0 0
    %750 = vmatpush2.bf16.msra.mxu0 0
    %751 = vmatprep.subr.bf16.mxu0 0
    %752 = vmatpush2.bf16.msra.mxu0 0
    %753 = vmatprep.subr.bf16.mxu0 0
    %754 = vmatpush2.bf16.msra.mxu0 0
    %755 = vmatprep.subr.bf16.mxu0 0
    %756 = vmatpush2.bf16.msra.mxu0 0
    %757 = vmatprep.subr.bf16.mxu0 0
    %758 = vmatpush2.bf16.msra.mxu0 0
    %759 = vmatprep.subr.bf16.mxu0 0
    %760 = vmatpush2.bf16.msra.mxu0 0
    %761 = vmatprep.mubr.bf16.mxu0 0
    %762 = vmatmul.mubr.bf16.gmra.mxu0 %v655
    %v763 = vpop.f32.mrf.mxu0
    %v764 = vadd.f32 %v679, %v763
    %v765 = vpop.f32.mrf.mxu0
    %v766 = vpop.f32.mrf.mxu0
    %v767 = vadd.f32 %v679, %v766
    %v768 = vpop.f32.mrf.mxu0
    %769 = vdwg.mxu0
    %v770 = vmax.f32 %v764, 0.0
    %v771 = vmax.f32 %v767, 0.0
    %v772 = vadd.f32 %v536, %v770
    %v773 = vadd.f32 %v537, %v771
    %v774 = vpack.c.bf16 %v773, %v772
    %v775 = vld [vmem:[#allocation6] sm:$0xf]
    %v776 = vld [vmem:[#allocation6 + $0x4] sm:$0xf]
    %v777 = vld [vmem:[#allocation6 + $0x8] sm:$0xf]
    %v778 = vld [vmem:[#allocation6 + $0xc] sm:$0xf]
    %v779 = vld [vmem:[#allocation6 + $0x10] sm:$0xf]
    %v780 = vld [vmem:[#allocation6 + $0x14] sm:$0xf]
    %v781 = vld [vmem:[#allocation6 + $0x18] sm:$0xf]
    %v782 = vld [vmem:[#allocation6 + $0x1c] sm:$0xf]
    %v783 = vld [vmem:[#allocation6 + $0x20] sm:$0xf]
    %v784 = vld [vmem:[#allocation6 + $0x24] sm:$0xf]
    %v785 = vld [vmem:[#allocation6 + $0x28] sm:$0xf]
    %v786 = vld [vmem:[#allocation6 + $0x2c] sm:$0xf]
    %v787 = vld [vmem:[#allocation6 + $0x30] sm:$0xf]
    %v788 = vld [vmem:[#allocation6 + $0x34] sm:$0xf]
    %v789 = vld [vmem:[#allocation6 + $0x38] sm:$0xf]
    %v790 = vld [vmem:[#allocation6 + $0x3c] sm:$0xf]
    %v791 = vld [vmem:[%s6] sm:$0x1]
    %v793 = vlaneseq
    %v794 = vshrl.u32 %v793, 7
    %v795 = vsub.s32 0, %v794
    %v796 = vrot.slane %v791, %v795
    %v814 = vunpack.c.l.b16 %v775
    %v815 = vunpack.c.l.b16 %v776
    %v816 = vunpack.c.l.b16 %v777
    %v817 = vunpack.c.l.b16 %v778
    %v818 = vunpack.c.l.b16 %v779
    %v819 = vunpack.c.l.b16 %v780
    %v820 = vunpack.c.l.b16 %v781
    %v821 = vunpack.c.l.b16 %v782
    %v822 = vunpack.c.l.b16 %v783
    %v823 = vunpack.c.l.b16 %v784
    %v824 = vunpack.c.l.b16 %v785
    %v825 = vunpack.c.l.b16 %v786
    %v826 = vunpack.c.l.b16 %v787
    %v827 = vunpack.c.l.b16 %v788
    %v828 = vunpack.c.l.b16 %v789
    %v829 = vunpack.c.l.b16 %v790
    %v830 = vpack.c.b16 %v815, %v814
    %v831 = vpack.c.b16 %v817, %v816
    %v832 = vpack.c.b16 %v819, %v818
    %v833 = vpack.c.b16 %v821, %v820
    %v834 = vpack.c.b16 %v823, %v822
    %v835 = vpack.c.b16 %v825, %v824
    %v836 = vpack.c.b16 %v827, %v826
    %v837 = vpack.c.b16 %v829, %v828
    %846 = vmatprep.subr.bf16.mxu0 0
    %847 = vmatpush1.bf16.msra.mxu0 %v837
    %848 = vmatprep.subr.bf16.mxu0 0
    %849 = vmatpush1.bf16.msra.mxu0 %v836
    %850 = vmatprep.subr.bf16.mxu0 0
    %851 = vmatpush1.bf16.msra.mxu0 %v835
    %852 = vmatprep.subr.bf16.mxu0 0
    %853 = vmatpush1.bf16.msra.mxu0 %v834
    %854 = vmatprep.subr.bf16.mxu0 0
    %855 = vmatpush1.bf16.msra.mxu0 %v833
    %856 = vmatprep.subr.bf16.mxu0 0
    %857 = vmatpush1.bf16.msra.mxu0 %v832
    %858 = vmatprep.subr.bf16.mxu0 0
    %859 = vmatpush1.bf16.msra.mxu0 %v831
    %860 = vmatprep.subr.bf16.mxu0 0
    %861 = vmatpush1.bf16.msra.mxu0 %v830
    %862 = vmatprep.subr.bf16.mxu0 0
    %863 = vmatpush2.bf16.msra.mxu0 0
    %864 = vmatprep.subr.bf16.mxu0 0
    %865 = vmatpush2.bf16.msra.mxu0 0
    %866 = vmatprep.subr.bf16.mxu0 0
    %867 = vmatpush2.bf16.msra.mxu0 0
    %868 = vmatprep.subr.bf16.mxu0 0
    %869 = vmatpush2.bf16.msra.mxu0 0
    %870 = vmatprep.subr.bf16.mxu0 0
    %871 = vmatpush2.bf16.msra.mxu0 0
    %872 = vmatprep.subr.bf16.mxu0 0
    %873 = vmatpush2.bf16.msra.mxu0 0
    %874 = vmatprep.subr.bf16.mxu0 0
    %875 = vmatpush2.bf16.msra.mxu0 0
    %876 = vmatprep.subr.bf16.mxu0 0
    %877 = vmatpush2.bf16.msra.mxu0 0
    %878 = vmatprep.mubr.bf16.mxu0 0
    %879 = vmatmul.mubr.bf16.gmra.mxu0 %v774
    %v880 = vpop.f32.mrf.mxu0
    %v881 = vadd.f32 %v796, %v880
    %v882 = vpop.f32.mrf.mxu0
    %v883 = vpop.f32.mrf.mxu0
    %v884 = vadd.f32 %v796, %v883
    %v885 = vpop.f32.mrf.mxu0
    %886 = vdwg.mxu0
    %887 = vst [vmem:[%s7] sm:$0xff] %v881
    %888 = vst [vmem:[%s7 + $0x8] sm:$0xff] %v884
    // Predicated region
    $region42: #{_resnet_forward_impl.1} parent=1 // pred_check
      _
    $region43: #{_resnet_forward_impl.1} parent=1 // pred_check_branch
      %890 = sbr.rel (0) target = $region45
    $region44: #{_resnet_forward_impl.1} parent=1 // pred_region
      _
    $region45: #{_resnet_forward_impl.1} parent=1 // pred_fallthru
      _
    // Predicated region
    $region46: #{_resnet_forward_impl.1} parent=1 // pred_check
      _
    $region47: #{_resnet_forward_impl.1} parent=1 // pred_check_branch
      %892 = sbr.rel (0) target = $region49
    $region48: #{_resnet_forward_impl.1} parent=1 // pred_region
      _
    $region49: #{_resnet_forward_impl.1} parent=1 // pred_fallthru
      _
    %893 = vsyncpa [#allocation3], 1
    %894 = vsyncpa [#allocation5], 1

</llo_original>
